<compile_context>
chip_gen: v7x
topology: tpu7x:2x2x1
jax: 0.10.0
libtpu: 0.0.40
codegen_flags: <defaults>
</compile_context>

<pallas_src>
import math
import functools

import jax
import jax.numpy as jnp
from jax import lax
from jax.experimental import pallas as pl
from jax.experimental.pallas import tpu as pltpu


def _round_up(x, m):
    return -(-x // m) * m


def _tpu_generation():
    """Best-effort TPU generation from device_kind (0 if unknown)."""
    try:
        kind = jax.devices()[0].device_kind.lower()
    except Exception:
        return 0
    for gen in (7, 6, 5, 4, 3, 2):
        if f"v{gen}" in kind or kind.startswith(f"tpu{gen}"):
            return gen
    return 0


def _defaults():
    """(exp_dtype, tq, tj) tuned per TPU generation."""
    gen = _tpu_generation()
    if gen >= 6:              # v6e / v7x: bf16 EUP/VPU, larger tiles are fine
        return jnp.bfloat16, 256, 512
    if gen == 5:              # v5e: no bf16 elementwise path, 1 vst slot
        return jnp.float32, 128, 256
    return jnp.float32, 256, 256   # unknown / older: conservative


def _cam_flash_kernel(q_ref, k_ref, vr_ref, o_ref,
                      qs_sc, m_sc, l_sc, ws_sc, *, inv_sqrt_c, exp_dtype):
    # q_ref  : (1, TQ, Cp)  pre-transposed query columns for this q tile
    # k_ref  : (1, Cp, TJ)  key columns for this j tile
    # vr_ref : (1, TJ, 2)   reduction RHS: [:, 0] = key validity mask, [:, 1] = v
    # o_ref  : (1, TQ, 1)   output block (revisited across the j axis)
    # qs_sc  : (TQ, Cp) f32 scaled query, resident across the whole j sweep
    # m_sc / l_sc / ws_sc : (TQ, 1) f32 online-softmax carries
    ji = pl.program_id(2)

    @pl.when(ji == 0)
    def _init():
        # Hoisted out of the j loop: single cast + 1/sqrt(C) scale per q tile.
        qs_sc[...] = q_ref[0].astype(jnp.float32) * inv_sqrt_c
        m_sc[...] = jnp.full(m_sc.shape, -jnp.inf, jnp.float32)
        l_sc[...] = jnp.zeros(l_sc.shape, jnp.float32)
        ws_sc[...] = jnp.zeros(ws_sc.shape, jnp.float32)

    # Energy tile on the MXU (canonical (TQ,Cp)@(Cp,TJ); K = C is tiny, so the
    # MXU is mostly idle -- which is why the reductions below also go there).
    e = lax.dot_general(qs_sc[...], k_ref[0].astype(jnp.float32),
                        (((1,), (0,)), ((), ())),
                        preferred_element_type=jnp.float32)          # (TQ, TJ)

    m_prev = m_sc[...]                                               # (TQ, 1)
    m_new = jnp.maximum(m_prev, jnp.max(e, axis=-1, keepdims=True))
    alpha = jnp.exp(m_prev - m_new)                                  # (TQ, 1)
    # EUP-bound inner step: exp over the (TQ, TJ) tile (bf16 on v6e/v7x).
    p = jnp.exp((e - m_new).astype(exp_dtype))                       # (TQ, TJ)

    # Both row reductions on the MXU: rhs column 0 is the key-column validity
    # mask (1 real / 0 padded), column 1 is v (0 in padded columns).  Padded
    # key columns therefore contribute nothing to l or ws -- no mask add on e.
    rhs = vr_ref[0].astype(exp_dtype)                                # (TJ, 2)
    red = lax.dot_general(p, rhs, (((1,), (0,)), ((), ())),
                          preferred_element_type=jnp.float32)        # (TQ, 2)
    l_sc[...] = alpha * l_sc[...] + red[:, 0:1]
    ws_sc[...] = alpha * ws_sc[...] + red[:, 1:2]
    m_sc[...] = m_new

    @pl.when(ji == pl.num_programs(2) - 1)
    def _finalize():
        # Exact reciprocal: runs once per (b, q-tile), cost negligible.
        out = ws_sc[...] * pl.reciprocal(l_sc[...], approx=False)    # (TQ, 1)
        o_ref[0] = out.astype(o_ref.dtype)


def cam_module(query, key, value, in_dim, *, tq=None, tj=None, exp_dtype=None):
    """Pallas implementation of CAM_Module.forward."""
    B, C, H, W = query.shape
    N = H * W
    if value.shape[0] != B or value.size // B != N:
        raise ValueError(
            f"value must flatten to (B, 1, {N}); got shape {value.shape}")

    d_exp, d_tq, d_tj = _defaults()
    exp_dtype = d_exp if exp_dtype is None else exp_dtype
    tq = d_tq if tq is None else tq
    tj = d_tj if tj is None else tj

    # Lane-aligned tiles, clamped for small N.  Query rows and key columns are
    # padded independently (no lcm padding -> no wasted exp sweeps).
    n128 = _round_up(N, 128)
    tq = min(_round_up(tq, 128), n128)
    tj = min(_round_up(tj, 128), n128)
    nq_pad = _round_up(N, tq)
    nk_pad = _round_up(N, tj)

    # Megacore (v7x has 2 TensorCores): make sure the parallel grid extent
    # B * (nq_pad // tq) is at least 2 when N allows it.
    if B * (nq_pad // tq) < 2 and n128 > 128:
        tq = 128
        nq_pad = _round_up(N, tq)

    c_pad = _round_up(C, 8)

    # Query pre-transposed to (B, N, C) so the kernel matmul is canonical;
    # zero-pad rows/channels (zeros contribute nothing to the dot product).
    qt = query.reshape(B, C, N).transpose(0, 2, 1)
    qt = jnp.pad(qt, ((0, 0), (0, nq_pad - N), (0, c_pad - C)))
    k = jnp.pad(key.reshape(B, C, N), ((0, 0), (0, c_pad - C), (0, nk_pad - N)))

    # Reduction RHS (B, Nk_pad, 2): [:, :, 0] = key-column validity mask,
    # [:, :, 1] = value (zero in padded columns).
    colmask = (jnp.arange(nk_pad) < N).astype(jnp.float32)
    v_flat = jnp.pad(value.reshape(B, N).astype(jnp.float32),
                     ((0, 0), (0, nk_pad - N)))
    vr = jnp.stack([jnp.broadcast_to(colmask, (B, nk_pad)), v_flat], axis=-1)

    kernel = functools.partial(_cam_flash_kernel,
                               inv_sqrt_c=1.0 / math.sqrt(in_dim),
                               exp_dtype=exp_dtype)

    out = pl.pallas_call(
        kernel,
        out_shape=jax.ShapeDtypeStruct((B, nq_pad, 1), query.dtype),
        grid_spec=pltpu.PrefetchScalarGridSpec(
            num_scalar_prefetch=0,
            grid=(B, nq_pad // tq, nk_pad // tj),
            in_specs=[
                pl.BlockSpec((1, tq, c_pad), lambda b, qi, ji: (b, qi, 0)),  # q^T
                pl.BlockSpec((1, c_pad, tj), lambda b, qi, ji: (b, 0, ji)),  # key
                pl.BlockSpec((1, tj, 2),     lambda b, qi, ji: (b, ji, 0)),  # [mask,v]
            ],
            out_specs=pl.BlockSpec((1, tq, 1), lambda b, qi, ji: (b, qi, 0)),
            scratch_shapes=[
                pltpu.VMEM((tq, c_pad), jnp.float32),  # scaled query (hoisted)
                pltpu.VMEM((tq, 1), jnp.float32),      # m  (running max)
                pltpu.VMEM((tq, 1), jnp.float32),      # l  (running denominator)
                pltpu.VMEM((tq, 1), jnp.float32),      # ws (running weighted sum)
            ],
        ),
        compiler_params=pltpu.CompilerParams(
            dimension_semantics=("parallel", "parallel", "arbitrary"),
            vmem_limit_bytes=32 * 1024 * 1024,
        ),
    )(qt, k, vr)

    # (B, nq_pad, 1) -> drop padded query rows -> PyTorch's out.view(B, 1, W, H)
    return out[:, :N, 0].reshape(B, 1, W, H)


def _cam_ref(query, key, value, in_dim):
    """Pure-JAX reference mirroring the PyTorch forward exactly."""
    B, C, H, W = query.shape
    N = H * W
    pq = query.reshape(B, C, N).transpose(0, 2, 1)          # B x N x C
    pk = key.reshape(B, C, N)                               # B x C x N
    energy = jnp.einsum('bnc,bcm->bnm', pq, pk) / math.sqrt(in_dim)
    attn = jax.nn.softmax(energy, axis=-1)                  # B x N x N
    pv = value.reshape(B, 1, N)                             # B x 1 x N
    out = jnp.einsum('bon,bmn->bom', pv, attn)              # B x 1 x N
    return out.reshape(B, 1, W, H)


if __name__ == "__main__":
    B, C = 2, 4

    def _check(H, W, tol, **kw):
        key0 = jax.random.PRNGKey(0)
        kq, kk, kv = jax.random.split(key0, 3)
        query = jax.random.normal(kq, (B, C, H, W), jnp.float32)
        key_t = jax.random.normal(kk, (B, C, H, W), jnp.float32)
        value = jax.random.normal(kv, (B, 1, H, W), jnp.float32)

        out = jax.block_until_ready(
            cam_module(query, key_t, value, in_dim=C, **kw))
        ref = _cam_ref(query, key_t, value, in_dim=C)
        assert out.shape == (B, 1, W, H), out.shape
        err = float(jnp.max(jnp.abs(out - ref)))
        assert jnp.allclose(out, ref, atol=tol, rtol=tol), err

    # f32-exp accuracy runs (tight tolerance):
    #   multi-tile online softmax: N=256 with tq=tj=128 -> grid (B, 2, 2)
    _check(16, 16, 2e-3, tq=128, tj=128, exp_dtype=jnp.float32)
    #   padding / masked-key-column path: N=144 padded to 256
    _check(12, 12, 2e-3, exp_dtype=jnp.float32)
    # Per-generation default path (bf16 exp on v6e/v7x): sanity check with a
    # looser tolerance; the f32 runs above establish numerical parity.
    bf16_default = _defaults()[0] == jnp.bfloat16
    _check(16, 16, 1e-1 if bf16_default else 2e-3)

    print("KERNEL_OK")
</pallas_src>

<mosaic_0001>
module attributes {stable_mosaic.version = 11 : i64} {
  func.func @_cam_flash_kernel(%arg0: i32, %arg1: i32, %arg2: i32, %arg3: memref<1x128x8xf32, #tpu.memory_space<vmem>>, %arg4: memref<1x8x128xf32, #tpu.memory_space<vmem>>, %arg5: memref<1x128x2xf32, #tpu.memory_space<vmem>>, %arg6: memref<1x128x1xf32, #tpu.memory_space<vmem>>, %arg7: memref<128x8xf32, #tpu.memory_space<vmem>>, %arg8: memref<128x1xf32, #tpu.memory_space<vmem>>, %arg9: memref<128x1xf32, #tpu.memory_space<vmem>>, %arg10: memref<128x1xf32, #tpu.memory_space<vmem>>) attributes {dimension_semantics = [#tpu.dimension_semantics<parallel>, #tpu.dimension_semantics<parallel>, #tpu.dimension_semantics<arbitrary>], iteration_bounds = array<i64: 2, 2, 2>, scalar_prefetch = 0 : i64, scratch_operands = 4 : i64, tpu.core_type = #tpu.core_type<tc>, window_params = [{transform_indices = @transform_0, window_bounds = array<i64: 1, 128, 8>}, {transform_indices = @transform_1, window_bounds = array<i64: 1, 8, 128>}, {transform_indices = @transform_2, window_bounds = array<i64: 1, 128, 2>}, {transform_indices = @transform_3, window_bounds = array<i64: 1, 128, 1>}]} {
    %c0_i32 = arith.constant 0 : i32
    %0 = arith.cmpi eq, %arg2, %c0_i32 : i32
    %1 = arith.extui %0 : i1 to i32
    %c0_i32_0 = arith.constant 0 : i32
    %2 = arith.cmpi ne, %1, %c0_i32_0 : i32
    scf.if %2 {
      %c0_23 = arith.constant 0 : index
      %c0_24 = arith.constant 0 : index
      %c0_25 = arith.constant 0 : index
      %33 = vector.load %arg3[%c0_23, %c0_24, %c0_25] : memref<1x128x8xf32, #tpu.memory_space<vmem>>, vector<1x128x8xf32>
      %34 = vector.shape_cast %33 : vector<1x128x8xf32> to vector<128x8xf32>
      %cst_26 = arith.constant 5.000000e-01 : f32
      %35 = vector.broadcast %cst_26 : f32 to vector<128x8xf32>
      %36 = arith.mulf %34, %35 : vector<128x8xf32>
      %c0_27 = arith.constant 0 : index
      %c0_28 = arith.constant 0 : index
      %37 = vector.load %arg7[%c0_27, %c0_28] : memref<128x8xf32, #tpu.memory_space<vmem>>, vector<128x8xf32>
      tpu.vector_store %arg7[%c0_27, %c0_28], %36 {strides = array<i32>} : memref<128x8xf32, #tpu.memory_space<vmem>>, vector<128x8xf32>,
      %cst_29 = arith.constant 0xFF800000 : f32
      %38 = vector.broadcast %cst_29 : f32 to vector<128x1xf32>
      %c0_30 = arith.constant 0 : index
      %c0_31 = arith.constant 0 : index
      %39 = vector.load %arg8[%c0_30, %c0_31] : memref<128x1xf32, #tpu.memory_space<vmem>>, vector<128x1xf32>
      tpu.vector_store %arg8[%c0_30, %c0_31], %38 {strides = array<i32>} : memref<128x1xf32, #tpu.memory_space<vmem>>, vector<128x1xf32>,
      %cst_32 = arith.constant 0.000000e+00 : f32
      %40 = vector.broadcast %cst_32 : f32 to vector<128x1xf32>
      %c0_33 = arith.constant 0 : index
      %c0_34 = arith.constant 0 : index
      %41 = vector.load %arg9[%c0_33, %c0_34] : memref<128x1xf32, #tpu.memory_space<vmem>>, vector<128x1xf32>
      tpu.vector_store %arg9[%c0_33, %c0_34], %40 {strides = array<i32>} : memref<128x1xf32, #tpu.memory_space<vmem>>, vector<128x1xf32>,
      %cst_35 = arith.constant 0.000000e+00 : f32
      %42 = vector.broadcast %cst_35 : f32 to vector<128x1xf32>
      %c0_36 = arith.constant 0 : index
      %c0_37 = arith.constant 0 : index
      %43 = vector.load %arg10[%c0_36, %c0_37] : memref<128x1xf32, #tpu.memory_space<vmem>>, vector<128x1xf32>
      tpu.vector_store %arg10[%c0_36, %c0_37], %42 {strides = array<i32>} : memref<128x1xf32, #tpu.memory_space<vmem>>, vector<128x1xf32>,
    } else {
    }
    %c0 = arith.constant 0 : index
    %c0_1 = arith.constant 0 : index
    %3 = vector.load %arg7[%c0, %c0_1] : memref<128x8xf32, #tpu.memory_space<vmem>>, vector<128x8xf32>
    %c0_2 = arith.constant 0 : index
    %c0_3 = arith.constant 0 : index
    %c0_4 = arith.constant 0 : index
    %4 = vector.load %arg4[%c0_2, %c0_3, %c0_4] : memref<1x8x128xf32, #tpu.memory_space<vmem>>, vector<1x8x128xf32>
    %5 = vector.shape_cast %4 : vector<1x8x128xf32> to vector<8x128xf32>
    %cst = arith.constant dense<0.000000e+00> : vector<128x128xf32>
    %6 = tpu.matmul %3, %5, %cst {dimension_numbers = #tpu.dot_dimension_numbers<[1], [0], [0], [1], [0, 0, 1, 1], [], []>} : vector<128x8xf32>, vector<8x128xf32>, vector<128x128xf32> -> vector<128x128xf32>
    %c0_5 = arith.constant 0 : index
    %c0_6 = arith.constant 0 : index
    %7 = vector.load %arg8[%c0_5, %c0_6] : memref<128x1xf32, #tpu.memory_space<vmem>>, vector<128x1xf32>
    %cst_7 = arith.constant dense<0xFF800000> : vector<128xf32>
    %8 = vector.multi_reduction <maximumf>, %6, %cst_7 [1] : vector<128x128xf32> to vector<128xf32>
    %9 = vector.shape_cast %8 : vector<128xf32> to vector<128x1xf32>
    %10 = arith.maximumf %7, %9 : vector<128x1xf32>
    %11 = arith.subf %7, %10 : vector<128x1xf32>
    %12 = math.exp %11 : vector<128x1xf32>
    %13 = vector.broadcast %10 : vector<128x1xf32> to vector<128x128xf32>
    %14 = arith.subf %6, %13 : vector<128x128xf32>
    %15 = math.exp %14 : vector<128x128xf32>
    %c0_8 = arith.constant 0 : index
    %c0_9 = arith.constant 0 : index
    %c0_10 = arith.constant 0 : index
    %16 = vector.load %arg5[%c0_8, %c0_9, %c0_10] : memref<1x128x2xf32, #tpu.memory_space<vmem>>, vector<1x128x2xf32>
    %17 = vector.shape_cast %16 : vector<1x128x2xf32> to vector<128x2xf32>
    %cst_11 = arith.constant dense<0.000000e+00> : vector<128x2xf32>
    %18 = tpu.matmul %15, %17, %cst_11 {dimension_numbers = #tpu.dot_dimension_numbers<[1], [0], [0], [1], [0, 0, 1, 1], [], []>} : vector<128x128xf32>, vector<128x2xf32>, vector<128x2xf32> -> vector<128x2xf32>
    %c0_12 = arith.constant 0 : index
    %c0_13 = arith.constant 0 : index
    %19 = vector.load %arg9[%c0_12, %c0_13] : memref<128x1xf32, #tpu.memory_space<vmem>>, vector<128x1xf32>
    %20 = arith.mulf %12, %19 : vector<128x1xf32>
    %21 = vector.extract_strided_slice %18 {offsets = [0, 0], sizes = [128, 1], strides = [1, 1]} : vector<128x2xf32> to vector<128x1xf32>
    %22 = arith.addf %20, %21 : vector<128x1xf32>
    %c0_14 = arith.constant 0 : index
    %c0_15 = arith.constant 0 : index
    %23 = vector.load %arg9[%c0_14, %c0_15] : memref<128x1xf32, #tpu.memory_space<vmem>>, vector<128x1xf32>
    tpu.vector_store %arg9[%c0_14, %c0_15], %22 {strides = array<i32>} : memref<128x1xf32, #tpu.memory_space<vmem>>, vector<128x1xf32>,
    %c0_16 = arith.constant 0 : index
    %c0_17 = arith.constant 0 : index
    %24 = vector.load %arg10[%c0_16, %c0_17] : memref<128x1xf32, #tpu.memory_space<vmem>>, vector<128x1xf32>
    %25 = arith.mulf %12, %24 : vector<128x1xf32>
    %26 = vector.extract_strided_slice %18 {offsets = [0, 1], sizes = [128, 1], strides = [1, 1]} : vector<128x2xf32> to vector<128x1xf32>
    %27 = arith.addf %25, %26 : vector<128x1xf32>
    %c0_18 = arith.constant 0 : index
    %c0_19 = arith.constant 0 : index
    %28 = vector.load %arg10[%c0_18, %c0_19] : memref<128x1xf32, #tpu.memory_space<vmem>>, vector<128x1xf32>
    tpu.vector_store %arg10[%c0_18, %c0_19], %27 {strides = array<i32>} : memref<128x1xf32, #tpu.memory_space<vmem>>, vector<128x1xf32>,
    %c0_20 = arith.constant 0 : index
    %c0_21 = arith.constant 0 : index
    %29 = vector.load %arg8[%c0_20, %c0_21] : memref<128x1xf32, #tpu.memory_space<vmem>>, vector<128x1xf32>
    tpu.vector_store %arg8[%c0_20, %c0_21], %10 {strides = array<i32>} : memref<128x1xf32, #tpu.memory_space<vmem>>, vector<128x1xf32>,
    %c1_i32 = arith.constant 1 : i32
    %30 = arith.cmpi eq, %arg2, %c1_i32 : i32
    %31 = arith.extui %30 : i1 to i32
    %c0_i32_22 = arith.constant 0 : i32
    %32 = arith.cmpi ne, %31, %c0_i32_22 : i32
    scf.if %32 {
      %c0_23 = arith.constant 0 : index
      %c0_24 = arith.constant 0 : index
      %33 = vector.load %arg10[%c0_23, %c0_24] : memref<128x1xf32, #tpu.memory_space<vmem>>, vector<128x1xf32>
      %c0_25 = arith.constant 0 : index
      %c0_26 = arith.constant 0 : index
      %34 = vector.load %arg9[%c0_25, %c0_26] : memref<128x1xf32, #tpu.memory_space<vmem>>, vector<128x1xf32>
      %35 = tpu.reciprocal %34 : vector<128x1xf32> -> vector<128x1xf32>
      %36 = arith.mulf %33, %35 : vector<128x1xf32>
      %c0_27 = arith.constant 0 : index
      %c0_28 = arith.constant 0 : index
      %c0_29 = arith.constant 0 : index
      %37 = vector.load %arg6[%c0_27, %c0_28, %c0_29] : memref<1x128x1xf32, #tpu.memory_space<vmem>>, vector<1x128x1xf32>
      %38 = vector.shape_cast %37 : vector<1x128x1xf32> to vector<128x1xf32>
      %39 = vector.shape_cast %36 : vector<128x1xf32> to vector<1x128x1xf32>
      tpu.vector_store %arg6[%c0_27, %c0_28, %c0_29], %39 {strides = array<i32>} : memref<1x128x1xf32, #tpu.memory_space<vmem>>, vector<1x128x1xf32>,
    } else {
    }
    return
  }
  func.func @transform_0(%arg0: i32, %arg1: i32, %arg2: i32) -> (i32, i32, i32) {
    %c0_i32 = arith.constant 0 : i32
    %c0_i32_0 = arith.constant 0 : i32
    return %arg0, %arg1, %c0_i32 : i32, i32, i32
  }
  func.func @transform_1(%arg0: i32, %arg1: i32, %arg2: i32) -> (i32, i32, i32) {
    %c0_i32 = arith.constant 0 : i32
    %c0_i32_0 = arith.constant 0 : i32
    return %arg0, %c0_i32, %arg2 : i32, i32, i32
  }
  func.func @transform_2(%arg0: i32, %arg1: i32, %arg2: i32) -> (i32, i32, i32) {
    %c0_i32 = arith.constant 0 : i32
    %c0_i32_0 = arith.constant 0 : i32
    return %arg0, %arg2, %c0_i32 : i32, i32, i32
  }
  func.func @transform_3(%arg0: i32, %arg1: i32, %arg2: i32) -> (i32, i32, i32) {
    %c0_i32 = arith.constant 0 : i32
    %c0_i32_0 = arith.constant 0 : i32
    return %arg0, %arg1, %c0_i32 : i32, i32, i32
  }
}

</mosaic_0001>

<llo_original>
// kernel: tpu_custom_call.1
$region0: #{tpu_custom_call.1}
  #allocation0 [shape = 'u32[]', space=smem, size = 0x4, offset = 0x4, fixed_abs, tag = 'smem constant byte address 0x4 - core index']
  #allocation1 [shape = 'u32[144,128]{1,0:T(1,128)}', space=vmem, size = 0x12000, scoped, tag = 'internal scratch']
  #allocation2 [shape = 'f32[128,8]{1,0:T(8,128)}', space=vmem, size = 0x10000, scoped, tag = 'scratch operand']
  #allocation3 [shape = 'f32[128,1]{1,0:T(8,128)}', space=vmem, size = 0x10000, scoped, tag = 'scratch operand']
  #allocation4 [shape = 'f32[128,1]{1,0:T(8,128)}', space=vmem, size = 0x10000, scoped, tag = 'scratch operand']
  #allocation5 [shape = 'f32[128,1]{1,0:T(8,128)}', space=vmem, size = 0x10000, scoped, tag = 'scratch operand']
  %s0 = inlined_call_operand.vmem [shape: f32[2,256,8], index: 0, kind: input, shape index: {}]
  %s1 = inlined_call_operand.vmem [shape: f32[2,8,256], index: 1, kind: input, shape index: {}]
  %s2 = inlined_call_operand.vmem [shape: f32[2,256,2], index: 2, kind: input, shape index: {}]
  %s3 = inlined_call_operand.vmem [shape: f32[2,256,1], index: 3, kind: output, shape index: {}]
  %s4 = sld [smem:[#allocation0]]
  $region53: #{tpu_custom_call.1} parent=0
    _
  %s6 = ssub.s32 1, %s4
  %s7 = scalar_select 0, %s6, %s4
  loop: start=0, step=1, limit=10
  $region2: #{tpu_custom_call.1} parent=0 // loop_pre_header
    _
  $region3: #{tpu_custom_call.1} parent=0 // loop_header
    %s9 = sphi 0, %s13
    %p10 = scmp.ge.s32.totalorder %s9, 10
    %s16 = sphi 0, %s35
    %s17 = sphi 0, %s31
    %s18 = sphi 0, %s27
    %s19 = sphi 0, %s16
    %s20 = sphi 0, %s17
    %s21 = sphi 0, %s18
    %s22 = sphi 0, %s19
    %s23 = sphi 0, %s20
    %s24 = sphi 0, %s21
    %s40 = sphi 0, %s42
    %s43 = sphi 0, %s40
    %s44 = sphi 0, %s43
    %s60 = sphi 0, %s44
    %s68 = sphi 0, %s70
    %s71 = sphi 0, %s68
    %s72 = sphi 0, %s71
    %s88 = sphi 0, %s72
    %s96 = sphi 0, %s98
    %s99 = sphi 0, %s96
    %s100 = sphi 0, %s99
    %s116 = sphi 0, %s100
    %s124 = sphi 0, %s126
    %s127 = sphi 0, %s124
    %s128 = sphi 0, %s127
    %s144 = sphi 0, %s128
  $region4: #{tpu_custom_call.1} parent=0 // loop_header_branch
    %12 = sbr.rel (%p10) target = $region8
  $region5: #{tpu_custom_call.1} parent=0 // loop_body
    %s14 = ssub.s32 %s9, 1
    %s15 = ssub.s32 %s9, 2
    %s25 = sadd.s32 1, %s18
    %p26 = scmp.ge.s32.totalorder %s25, 2
    %s27 = scalar_select %p26, 0, %s25
    %s28 = sadd.s32 1, %s17
    %s29 = scalar_select %p26, %s28, %s17
    %p30 = scmp.ge.s32.totalorder %s29, 2
    %s31 = scalar_select %p30, 0, %s29
    %s32 = sadd.s32 1, %s16
    %s33 = scalar_select %p30, %s32, %s16
    %p34 = scmp.ge.s32.totalorder %s33, 2
    %s35 = scalar_select %p34, 0, %s33
    %s36 = ssub.s32 %s16, %s35
    %s37 = ssub.s32 %s17, %s31
    %s38 = sor.u32 %s36, %s37
    %p39 = scmp.eq.s32.totalorder %s38, 0
    %s41 = sadd.s32 %s40, 1
    %s42 = scalar_select %p39, %s40, %s41
    %p45 = pneg %p39
    %p46 = scmp.eq.s32.totalorder %s9, 7
    %p47 = por %p45, %p46
    %p48 = scmp.ne.s32.totalorder %s40, %s43
    %p49 = scmp.eq.s32.totalorder %s9, 0
    %p50 = por %p48, %p49
    %p51 = scmp.ne.s32.totalorder %s40, %s43
    %p52 = scmp.eq.s32.totalorder %s14, 7
    %p53 = por %p51, %p52
    %p54 = scmp.ne.s32.totalorder %s43, %s44
    %p55 = scmp.eq.s32.totalorder %s14, 0
    %p56 = por %p54, %p55
    %p57 = scmp.ne.s32.totalorder %s43, %s44
    %p58 = scmp.eq.s32.totalorder %s15, 7
    %p59 = por %p57, %p58
    %p61 = scmp.ne.s32.totalorder %s44, %s60
    %p62 = scmp.eq.s32.totalorder %s15, 0
    %p63 = por %p61, %p62
    %s64 = ssub.s32 %s16, %s35
    %s65 = ssub.s32 %s18, %s27
    %s66 = sor.u32 %s64, %s65
    %p67 = scmp.eq.s32.totalorder %s66, 0
    %s69 = sadd.s32 %s68, 1
    %s70 = scalar_select %p67, %s68, %s69
    %p73 = pneg %p67
    %p74 = scmp.eq.s32.totalorder %s9, 7
    %p75 = por %p73, %p74
    %p76 = scmp.ne.s32.totalorder %s68, %s71
    %p77 = scmp.eq.s32.totalorder %s9, 0
    %p78 = por %p76, %p77
    %p79 = scmp.ne.s32.totalorder %s68, %s71
    %p80 = scmp.eq.s32.totalorder %s14, 7
    %p81 = por %p79, %p80
    %p82 = scmp.ne.s32.totalorder %s71, %s72
    %p83 = scmp.eq.s32.totalorder %s14, 0
    %p84 = por %p82, %p83
    %p85 = scmp.ne.s32.totalorder %s71, %s72
    %p86 = scmp.eq.s32.totalorder %s15, 7
    %p87 = por %p85, %p86
    %p89 = scmp.ne.s32.totalorder %s72, %s88
    %p90 = scmp.eq.s32.totalorder %s15, 0
    %p91 = por %p89, %p90
    %s92 = ssub.s32 %s16, %s35
    %s93 = ssub.s32 %s18, %s27
    %s94 = sor.u32 %s92, %s93
    %p95 = scmp.eq.s32.totalorder %s94, 0
    %s97 = sadd.s32 %s96, 1
    %s98 = scalar_select %p95, %s96, %s97
    %p101 = pneg %p95
    %p102 = scmp.eq.s32.totalorder %s9, 7
    %p103 = por %p101, %p102
    %p104 = scmp.ne.s32.totalorder %s96, %s99
    %p105 = scmp.eq.s32.totalorder %s9, 0
    %p106 = por %p104, %p105
    %p107 = scmp.ne.s32.totalorder %s96, %s99
    %p108 = scmp.eq.s32.totalorder %s14, 7
    %p109 = por %p107, %p108
    %p110 = scmp.ne.s32.totalorder %s99, %s100
    %p111 = scmp.eq.s32.totalorder %s14, 0
    %p112 = por %p110, %p111
    %p113 = scmp.ne.s32.totalorder %s99, %s100
    %p114 = scmp.eq.s32.totalorder %s15, 7
    %p115 = por %p113, %p114
    %p117 = scmp.ne.s32.totalorder %s100, %s116
    %p118 = scmp.eq.s32.totalorder %s15, 0
    %p119 = por %p117, %p118
    %s120 = ssub.s32 %s16, %s35
    %s121 = ssub.s32 %s17, %s31
    %s122 = sor.u32 %s120, %s121
    %p123 = scmp.eq.s32.totalorder %s122, 0
    %s125 = sadd.s32 %s124, 1
    %s126 = scalar_select %p123, %s124, %s125
    %p129 = pneg %p123
    %p130 = scmp.eq.s32.totalorder %s9, 7
    %p131 = por %p129, %p130
    %p132 = scmp.ne.s32.totalorder %s124, %s127
    %p133 = scmp.eq.s32.totalorder %s9, 0
    %p134 = por %p132, %p133
    %p135 = scmp.ne.s32.totalorder %s124, %s127
    %p136 = scmp.eq.s32.totalorder %s14, 7
    %p137 = por %p135, %p136
    %p138 = scmp.ne.s32.totalorder %s127, %s128
    %p139 = scmp.eq.s32.totalorder %s14, 0
    %p140 = por %p138, %p139
    %p141 = scmp.ne.s32.totalorder %s127, %s128
    %p142 = scmp.eq.s32.totalorder %s15, 7
    %p143 = por %p141, %p142
    %p145 = scmp.ne.s32.totalorder %s128, %s144
    %p146 = scmp.eq.s32.totalorder %s15, 0
    %p147 = por %p145, %p146
    %p148 = scmp.le.s32.totalorder 1, %s9
    %p149 = scmp.lt.s32.totalorder %s9, 9
    %p150 = pnand %p148, %p149
    %p151 = pneg %p150
    // Predicated region
    $region9: #{tpu_custom_call.1} parent=5 // pred_check
      _
    $region10: #{tpu_custom_call.1} parent=5 // pred_check_branch
      %153 = sbr.rel (%p150) target = $region12
    $region11: #{tpu_custom_call.1} parent=5 // pred_region
      %s154 = ssub.s32 %s9, 1
    $region12: #{tpu_custom_call.1} parent=5 // pred_fallthru
      _
    %p155 = scmp.lt.s32.totalorder %s9, 8
    // Predicated region
    $region13: #{tpu_custom_call.1} parent=5 // pred_check
      %p156 = pneg %p155
    $region14: #{tpu_custom_call.1} parent=5 // pred_check_branch
      %158 = sbr.rel (%p156) target = $region16
    $region15: #{tpu_custom_call.1} parent=5 // pred_region
      // Predicated region
      $region17: #{tpu_custom_call.1} parent=15 // pred_check
        %p159 = pneg %p50
      $region18: #{tpu_custom_call.1} parent=15 // pred_check_branch
        %161 = sbr.rel (%p159) target = $region20
      $region19: #{tpu_custom_call.1} parent=15 // pred_region
        %s162 = smul.u32 16, %s17
        %p163 = scmp.lt.s32.totalorder %s16, 1
        %s164 = scalar_select %p163, %s16, 1
        %p165 = scmp.lt.s32.totalorder %s162, 31
        %s166 = scalar_select %p165, %s162, 31
        %s167 = smul.addr %s164, 32
        %s168 = sadd.s32 %s166, %s167
        %s169 = smul.addr %s168, 8
        %s170 = scalar_lea.vmem %s0, %s169
        %s171 = smul.u32 16, %s17
      $region20: #{tpu_custom_call.1} parent=15 // pred_fallthru
        _
      // Predicated region
      $region21: #{tpu_custom_call.1} parent=15 // pred_check
        %p172 = pneg %p78
      $region22: #{tpu_custom_call.1} parent=15 // pred_check_branch
        %174 = sbr.rel (%p172) target = $region24
      $region23: #{tpu_custom_call.1} parent=15 // pred_region
        %p175 = scmp.lt.s32.totalorder %s16, 1
        %s176 = scalar_select %p175, %s16, 1
        %p177 = scmp.lt.s32.totalorder %s18, 1
        %s178 = scalar_select %p177, %s18, 1
        %s179 = smul.addr %s176, 2
        %s180 = sadd.s32 %s178, %s179
        %s181 = smul.addr %s180, 8
        %s182 = scalar_lea.vmem %s1, %s181
      $region24: #{tpu_custom_call.1} parent=15 // pred_fallthru
        _
      // Predicated region
      $region25: #{tpu_custom_call.1} parent=15 // pred_check
        %p183 = pneg %p106
      $region26: #{tpu_custom_call.1} parent=15 // pred_check_branch
        %185 = sbr.rel (%p183) target = $region28
      $region27: #{tpu_custom_call.1} parent=15 // pred_region
        %s186 = smul.u32 16, %s18
        %p187 = scmp.lt.s32.totalorder %s16, 1
        %s188 = scalar_select %p187, %s16, 1
        %p189 = scmp.lt.s32.totalorder %s186, 31
        %s190 = scalar_select %p189, %s186, 31
        %s191 = smul.addr %s188, 32
        %s192 = sadd.s32 %s190, %s191
        %s193 = smul.addr %s192, 8
        %s194 = scalar_lea.vmem %s2, %s193
        %s195 = smul.u32 16, %s18
      $region28: #{tpu_custom_call.1} parent=15 // pred_fallthru
        _
    $region16: #{tpu_custom_call.1} parent=5 // pred_fallthru
      _
    %p196 = scmp.le.s32.totalorder 1, %s9
    %p197 = scmp.lt.s32.totalorder %s9, 9
    %p198 = pnand %p196, %p197
    %p199 = pneg %p198
    // Predicated region
    $region29: #{tpu_custom_call.1} parent=5 // pred_check
      _
    $region30: #{tpu_custom_call.1} parent=5 // pred_check_branch
      %201 = sbr.rel (%p198) target = $region32
    $region31: #{tpu_custom_call.1} parent=5 // pred_region
      %s202 = ssub.s32 %s9, 1
      %s203 = smul.u32 16, %s20
      %p204 = scmp.lt.s32.totalorder %s19, 1
      %s205 = scalar_select %p204, %s19, 1
      %p206 = scmp.lt.s32.totalorder %s203, 31
      %s207 = scalar_select %p206, %s203, 31
      %s208 = smul.addr %s205, 32
      %s209 = sadd.s32 %s207, %s208
      %s210 = smul.addr %s209, 8
      %s211 = scalar_lea.vmem %s0, %s210
      %p212 = pneg %p56
      %p213 = pneg %p53
      %p214 = scmp.lt.s32.totalorder %s19, 1
      %s215 = scalar_select %p214, %s19, 1
      %p216 = scmp.lt.s32.totalorder %s21, 1
      %s217 = scalar_select %p216, %s21, 1
      %s218 = smul.addr %s215, 2
      %s219 = sadd.s32 %s217, %s218
      %s220 = smul.addr %s219, 8
      %s221 = scalar_lea.vmem %s1, %s220
      %p222 = pneg %p84
      %p223 = pneg %p81
      %s224 = smul.u32 16, %s21
      %p225 = scmp.lt.s32.totalorder %s19, 1
      %s226 = scalar_select %p225, %s19, 1
      %p227 = scmp.lt.s32.totalorder %s224, 31
      %s228 = scalar_select %p227, %s224, 31
      %s229 = smul.addr %s226, 32
      %s230 = sadd.s32 %s228, %s229
      %s231 = smul.addr %s230, 8
      %s232 = scalar_lea.vmem %s2, %s231
      %p233 = pneg %p112
      %p234 = pneg %p109
      %p235 = pneg %p140
      %p236 = pneg %p137
      %s237 = smul.u32 16, %s20
      %p238 = scmp.lt.s32.totalorder %s19, 1
      %s239 = scalar_select %p238, %s19, 1
      %p240 = scmp.lt.s32.totalorder %s237, 31
      %s241 = scalar_select %p240, %s237, 31
      %s242 = smul.addr %s239, 32
      %s243 = sadd.s32 %s241, %s242
      %s244 = smul.addr %s243, 8
      %s245 = scalar_lea.vmem %s3, %s244
      %s246 = smul.u32 16, %s20
      %p247 = scmp.lt.s32.totalorder %s19, 1
      %s248 = scalar_select %p247, %s19, 1
      %p249 = scmp.lt.s32.totalorder %s246, 31
      %s250 = scalar_select %p249, %s246, 31
      %s251 = smul.addr %s248, 32
      %s252 = sadd.s32 %s250, %s251
      %s253 = smul.addr %s252, 8
      %s254 = scalar_lea.vmem %s0, %s253
      %s255 = smul.u32 16, %s20
      %p256 = scmp.lt.s32.totalorder %s19, 1
      %s257 = scalar_select %p256, %s19, 1
      %p258 = scmp.lt.s32.totalorder %s21, 1
      %s259 = scalar_select %p258, %s21, 1
      %s260 = smul.addr %s257, 2
      %s261 = sadd.s32 %s259, %s260
      %s262 = smul.addr %s261, 8
      %s263 = scalar_lea.vmem %s1, %s262
      %s264 = smul.u32 16, %s21
      %p265 = scmp.lt.s32.totalorder %s19, 1
      %s266 = scalar_select %p265, %s19, 1
      %p267 = scmp.lt.s32.totalorder %s264, 31
      %s268 = scalar_select %p267, %s264, 31
      %s269 = smul.addr %s266, 32
      %s270 = sadd.s32 %s268, %s269
      %s271 = smul.addr %s270, 8
      %s272 = scalar_lea.vmem %s2, %s271
      %s273 = smul.u32 16, %s21
      %s274 = smul.u32 16, %s20
      %p275 = scmp.lt.s32.totalorder %s19, 1
      %s276 = scalar_select %p275, %s19, 1
      %p277 = scmp.lt.s32.totalorder %s274, 31
      %s278 = scalar_select %p277, %s274, 31
      %s279 = smul.addr %s276, 32
      %s280 = sadd.s32 %s278, %s279
      %s281 = smul.addr %s280, 8
      %s282 = scalar_lea.vmem %s3, %s281
      %s283 = smul.u32 16, %s20
      %p284 = scmp.eq.s32.totalorder %s21, 0
      // Predicated region
      $region33: #{tpu_custom_call.1} parent=31 // pred_check
        %p285 = pneg %p284
      $region34: #{tpu_custom_call.1} parent=31 // pred_check_branch
        %287 = sbr.rel (%p285) target = $region36
      $region35: #{tpu_custom_call.1} parent=31 // pred_region
        %v288 = vld [vmem:[%s254] sm:$0xff]
        %v289 = vld [vmem:[%s254 + $0x8] sm:$0xff]
        %v290 = vld [vmem:[%s254 + $0x10] sm:$0xff]
        %v291 = vld [vmem:[%s254 + $0x18] sm:$0xff]
        %v292 = vld [vmem:[%s254 + $0x20] sm:$0xff]
        %v293 = vld [vmem:[%s254 + $0x28] sm:$0xff]
        %v294 = vld [vmem:[%s254 + $0x30] sm:$0xff]
        %v295 = vld [vmem:[%s254 + $0x38] sm:$0xff]
        %v296 = vld [vmem:[%s254 + $0x40] sm:$0xff]
        %v297 = vld [vmem:[%s254 + $0x48] sm:$0xff]
        %v298 = vld [vmem:[%s254 + $0x50] sm:$0xff]
        %v299 = vld [vmem:[%s254 + $0x58] sm:$0xff]
        %v300 = vld [vmem:[%s254 + $0x60] sm:$0xff]
        %v301 = vld [vmem:[%s254 + $0x68] sm:$0xff]
        %v302 = vld [vmem:[%s254 + $0x70] sm:$0xff]
        %v303 = vld [vmem:[%s254 + $0x78] sm:$0xff]
        %v304 = vmul.f32 %v288, 0.5
        %v305 = vmul.f32 %v289, 0.5
        %v306 = vmul.f32 %v290, 0.5
        %v307 = vmul.f32 %v291, 0.5
        %v308 = vmul.f32 %v292, 0.5
        %v309 = vmul.f32 %v293, 0.5
        %v310 = vmul.f32 %v294, 0.5
        %v311 = vmul.f32 %v295, 0.5
        %v312 = vmul.f32 %v296, 0.5
        %v313 = vmul.f32 %v297, 0.5
        %v314 = vmul.f32 %v298, 0.5
        %v315 = vmul.f32 %v299, 0.5
        %v316 = vmul.f32 %v300, 0.5
        %v317 = vmul.f32 %v301, 0.5
        %v318 = vmul.f32 %v302, 0.5
        %v319 = vmul.f32 %v303, 0.5
        %vm320 = vcmask 64512
        %321 = vst.msk [vmem:[#allocation2] sm:$0xff] %vm320, %v304
        %322 = vst.msk [vmem:[#allocation2 + $0x8] sm:$0xff] %vm320, %v305
        %323 = vst.msk [vmem:[#allocation2 + $0x10] sm:$0xff] %vm320, %v306
        %324 = vst.msk [vmem:[#allocation2 + $0x18] sm:$0xff] %vm320, %v307
        %325 = vst.msk [vmem:[#allocation2 + $0x20] sm:$0xff] %vm320, %v308
        %326 = vst.msk [vmem:[#allocation2 + $0x28] sm:$0xff] %vm320, %v309
        %327 = vst.msk [vmem:[#allocation2 + $0x30] sm:$0xff] %vm320, %v310
        %328 = vst.msk [vmem:[#allocation2 + $0x38] sm:$0xff] %vm320, %v311
        %329 = vst.msk [vmem:[#allocation2 + $0x40] sm:$0xff] %vm320, %v312
        %330 = vst.msk [vmem:[#allocation2 + $0x48] sm:$0xff] %vm320, %v313
        %331 = vst.msk [vmem:[#allocation2 + $0x50] sm:$0xff] %vm320, %v314
        %332 = vst.msk [vmem:[#allocation2 + $0x58] sm:$0xff] %vm320, %v315
        %333 = vst.msk [vmem:[#allocation2 + $0x60] sm:$0xff] %vm320, %v316
        %334 = vst.msk [vmem:[#allocation2 + $0x68] sm:$0xff] %vm320, %v317
        %335 = vst.msk [vmem:[#allocation2 + $0x70] sm:$0xff] %vm320, %v318
        %336 = vst.msk [vmem:[#allocation2 + $0x78] sm:$0xff] %vm320, %v319
        %vm337 = vcmask 7168
        %338 = vst.msk [vmem:[#allocation3] sm:$0xff] %vm337, -inf
        %339 = vst.msk [vmem:[#allocation3 + $0x8] sm:$0xff] %vm337, -inf
        %340 = vst.msk [vmem:[#allocation3 + $0x10] sm:$0xff] %vm337, -inf
        %341 = vst.msk [vmem:[#allocation3 + $0x18] sm:$0xff] %vm337, -inf
        %342 = vst.msk [vmem:[#allocation3 + $0x20] sm:$0xff] %vm337, -inf
        %343 = vst.msk [vmem:[#allocation3 + $0x28] sm:$0xff] %vm337, -inf
        %344 = vst.msk [vmem:[#allocation3 + $0x30] sm:$0xff] %vm337, -inf
        %345 = vst.msk [vmem:[#allocation3 + $0x38] sm:$0xff] %vm337, -inf
        %346 = vst.msk [vmem:[#allocation3 + $0x40] sm:$0xff] %vm337, -inf
        %347 = vst.msk [vmem:[#allocation3 + $0x48] sm:$0xff] %vm337, -inf
        %348 = vst.msk [vmem:[#allocation3 + $0x50] sm:$0xff] %vm337, -inf
        %349 = vst.msk [vmem:[#allocation3 + $0x58] sm:$0xff] %vm337, -inf
        %350 = vst.msk [vmem:[#allocation3 + $0x60] sm:$0xff] %vm337, -inf
        %351 = vst.msk [vmem:[#allocation3 + $0x68] sm:$0xff] %vm337, -inf
        %352 = vst.msk [vmem:[#allocation3 + $0x70] sm:$0xff] %vm337, -inf
        %353 = vst.msk [vmem:[#allocation3 + $0x78] sm:$0xff] %vm337, -inf
        %354 = vst.msk [vmem:[#allocation4] sm:$0xff] %vm337, 0.0
        %355 = vst.msk [vmem:[#allocation4 + $0x8] sm:$0xff] %vm337, 0.0
        %356 = vst.msk [vmem:[#allocation4 + $0x10] sm:$0xff] %vm337, 0.0
        %357 = vst.msk [vmem:[#allocation4 + $0x18] sm:$0xff] %vm337, 0.0
        %358 = vst.msk [vmem:[#allocation4 + $0x20] sm:$0xff] %vm337, 0.0
        %359 = vst.msk [vmem:[#allocation4 + $0x28] sm:$0xff] %vm337, 0.0
        %360 = vst.msk [vmem:[#allocation4 + $0x30] sm:$0xff] %vm337, 0.0
        %361 = vst.msk [vmem:[#allocation4 + $0x38] sm:$0xff] %vm337, 0.0
        %362 = vst.msk [vmem:[#allocation4 + $0x40] sm:$0xff] %vm337, 0.0
        %363 = vst.msk [vmem:[#allocation4 + $0x48] sm:$0xff] %vm337, 0.0
        %364 = vst.msk [vmem:[#allocation4 + $0x50] sm:$0xff] %vm337, 0.0
        %365 = vst.msk [vmem:[#allocation4 + $0x58] sm:$0xff] %vm337, 0.0
        %366 = vst.msk [vmem:[#allocation4 + $0x60] sm:$0xff] %vm337, 0.0
        %367 = vst.msk [vmem:[#allocation4 + $0x68] sm:$0xff] %vm337, 0.0
        %368 = vst.msk [vmem:[#allocation4 + $0x70] sm:$0xff] %vm337, 0.0
        %369 = vst.msk [vmem:[#allocation4 + $0x78] sm:$0xff] %vm337, 0.0
        %370 = vst.msk [vmem:[#allocation5] sm:$0xff] %vm337, 0.0
        %371 = vst.msk [vmem:[#allocation5 + $0x8] sm:$0xff] %vm337, 0.0
        %372 = vst.msk [vmem:[#allocation5 + $0x10] sm:$0xff] %vm337, 0.0
        %373 = vst.msk [vmem:[#allocation5 + $0x18] sm:$0xff] %vm337, 0.0
        %374 = vst.msk [vmem:[#allocation5 + $0x20] sm:$0xff] %vm337, 0.0
        %375 = vst.msk [vmem:[#allocation5 + $0x28] sm:$0xff] %vm337, 0.0
        %376 = vst.msk [vmem:[#allocation5 + $0x30] sm:$0xff] %vm337, 0.0
        %377 = vst.msk [vmem:[#allocation5 + $0x38] sm:$0xff] %vm337, 0.0
        %378 = vst.msk [vmem:[#allocation5 + $0x40] sm:$0xff] %vm337, 0.0
        %379 = vst.msk [vmem:[#allocation5 + $0x48] sm:$0xff] %vm337, 0.0
        %380 = vst.msk [vmem:[#allocation5 + $0x50] sm:$0xff] %vm337, 0.0
        %381 = vst.msk [vmem:[#allocation5 + $0x58] sm:$0xff] %vm337, 0.0
        %382 = vst.msk [vmem:[#allocation5 + $0x60] sm:$0xff] %vm337, 0.0
        %383 = vst.msk [vmem:[#allocation5 + $0x68] sm:$0xff] %vm337, 0.0
        %384 = vst.msk [vmem:[#allocation5 + $0x70] sm:$0xff] %vm337, 0.0
        %385 = vst.msk [vmem:[#allocation5 + $0x78] sm:$0xff] %vm337, 0.0
      $region36: #{tpu_custom_call.1} parent=31 // pred_fallthru
        _
      %v386 = vld [vmem:[#allocation2] sm:$0xff]
      %v387 = vld [vmem:[#allocation2 + $0x8] sm:$0xff]
      %v388 = vld [vmem:[#allocation2 + $0x10] sm:$0xff]
      %v389 = vld [vmem:[#allocation2 + $0x18] sm:$0xff]
      %v390 = vld [vmem:[#allocation2 + $0x20] sm:$0xff]
      %v391 = vld [vmem:[#allocation2 + $0x28] sm:$0xff]
      %v392 = vld [vmem:[#allocation2 + $0x30] sm:$0xff]
      %v393 = vld [vmem:[#allocation2 + $0x38] sm:$0xff]
      %v394 = vld [vmem:[#allocation2 + $0x40] sm:$0xff]
      %v395 = vld [vmem:[#allocation2 + $0x48] sm:$0xff]
      %v396 = vld [vmem:[#allocation2 + $0x50] sm:$0xff]
      %v397 = vld [vmem:[#allocation2 + $0x58] sm:$0xff]
      %v398 = vld [vmem:[#allocation2 + $0x60] sm:$0xff]
      %v399 = vld [vmem:[#allocation2 + $0x68] sm:$0xff]
      %v400 = vld [vmem:[#allocation2 + $0x70] sm:$0xff]
      %v401 = vld [vmem:[#allocation2 + $0x78] sm:$0xff]
      %v402 = vld [vmem:[%s263] sm:$0xff]
      %vm403 = vcmask 64512
      %v405 = vsel %vm403, %v386, 0
      %v408 = vsel %vm403, %v387, 0
      %v411 = vsel %vm403, %v388, 0
      %v414 = vsel %vm403, %v389, 0
      %v417 = vsel %vm403, %v390, 0
      %v420 = vsel %vm403, %v391, 0
      %v423 = vsel %vm403, %v392, 0
      %v426 = vsel %vm403, %v393, 0
      %v429 = vsel %vm403, %v394, 0
      %v432 = vsel %vm403, %v395, 0
      %v435 = vsel %vm403, %v396, 0
      %v438 = vsel %vm403, %v397, 0
      %v441 = vsel %vm403, %v398, 0
      %v444 = vsel %vm403, %v399, 0
      %v447 = vsel %vm403, %v400, 0
      %v450 = vsel %vm403, %v401, 0
      %452 = vmatprep.subr.mxu0 0.0
      %453 = vmatpush1.msra.mxu0 %v402
      %454 = vmatprep.subr.mxu0 0.0
      %455 = vmatpush1.msra.mxu0 0.0
      %456 = vmatprep.subr.mxu0 0.0
      %457 = vmatpush1.msra.mxu0 0.0
      %458 = vmatprep.subr.mxu0 0.0
      %459 = vmatpush1.msra.mxu0 0.0
      %460 = vmatprep.subr.mxu0 0.0
      %461 = vmatpush1.msra.mxu0 0.0
      %462 = vmatprep.subr.mxu0 0.0
      %463 = vmatpush1.msra.mxu0 0.0
      %464 = vmatprep.subr.mxu0 0.0
      %465 = vmatpush1.msra.mxu0 0.0
      %466 = vmatprep.subr.mxu0 0.0
      %467 = vmatpush1.msra.mxu0 0.0
      %468 = vmatprep.subr.mxu0 0.0
      %469 = vmatpush1.msra.mxu0 0.0
      %470 = vmatprep.subr.mxu0 0.0
      %471 = vmatpush1.msra.mxu0 0.0
      %472 = vmatprep.subr.mxu0 0.0
      %473 = vmatpush1.msra.mxu0 0.0
      %474 = vmatprep.subr.mxu0 0.0
      %475 = vmatpush1.msra.mxu0 0.0
      %476 = vmatprep.subr.mxu0 0.0
      %477 = vmatpush1.msra.mxu0 0.0
      %478 = vmatprep.subr.mxu0 0.0
      %479 = vmatpush1.msra.mxu0 0.0
      %480 = vmatprep.subr.mxu0 0.0
      %481 = vmatpush1.msra.mxu0 0.0
      %482 = vmatprep.subr.mxu0 0.0
      %483 = vmatpush1.msra.mxu0 0.0
      %484 = vmatprep.subr.mxu0 0.0
      %485 = vmatpush1.msra.mxu0 0.0
      %486 = vmatprep.subr.mxu0 0.0
      %487 = vmatpush1.msra.mxu0 0.0
      %488 = vmatprep.subr.mxu0 0.0
      %489 = vmatpush1.msra.mxu0 0.0
      %490 = vmatprep.subr.mxu0 0.0
      %491 = vmatpush1.msra.mxu0 0.0
      %492 = vmatprep.subr.mxu0 0.0
      %493 = vmatpush1.msra.mxu0 0.0
      %494 = vmatprep.subr.mxu0 0.0
      %495 = vmatpush1.msra.mxu0 0.0
      %496 = vmatprep.subr.mxu0 0.0
      %497 = vmatpush1.msra.mxu0 0.0
      %498 = vmatprep.subr.mxu0 0.0
      %499 = vmatpush1.msra.mxu0 0.0
      %500 = vmatprep.subr.mxu0 0.0
      %501 = vmatpush1.msra.mxu0 0.0
      %502 = vmatprep.subr.mxu0 0.0
      %503 = vmatpush1.msra.mxu0 0.0
      %504 = vmatprep.subr.mxu0 0.0
      %505 = vmatpush1.msra.mxu0 0.0
      %506 = vmatprep.subr.mxu0 0.0
      %507 = vmatpush1.msra.mxu0 0.0
      %508 = vmatprep.subr.mxu0 0.0
      %509 = vmatpush1.msra.mxu0 0.0
      %510 = vmatprep.subr.mxu0 0.0
      %511 = vmatpush1.msra.mxu0 0.0
      %512 = vmatprep.subr.mxu0 0.0
      %513 = vmatpush1.msra.mxu0 0.0
      %514 = vmatprep.subr.mxu0 0.0
      %515 = vmatpush1.msra.mxu0 0.0
      %516 = vmatprep.mubr.f32.mxu0 0.0
      %517 = vmatmul.mubr.f32.gmra.mrb[0].mxu0 %v405
      %v518 = vpop.f32.mrb[0].mxu0
      %v519 = vadd.f32 0.0, %v518
      %v520 = vpop.f32.mrb[0].mxu0
      %521 = vmatprep.mubr.f32.mxu0 0.0
      %522 = vmatmul.mubr.f32.gmra.mrb[0].mxu0 %v408
      %v523 = vpop.f32.mrb[0].mxu0
      %v524 = vadd.f32 0.0, %v523
      %v525 = vpop.f32.mrb[0].mxu0
      %526 = vmatprep.mubr.f32.mxu0 0.0
      %527 = vmatmul.mubr.f32.gmra.mrb[0].mxu0 %v411
      %v528 = vpop.f32.mrb[0].mxu0
      %v529 = vadd.f32 0.0, %v528
      %v530 = vpop.f32.mrb[0].mxu0
      %531 = vmatprep.mubr.f32.mxu0 0.0
      %532 = vmatmul.mubr.f32.gmra.mrb[0].mxu0 %v414
      %v533 = vpop.f32.mrb[0].mxu0
      %v534 = vadd.f32 0.0, %v533
      %v535 = vpop.f32.mrb[0].mxu0
      %536 = vmatprep.mubr.f32.mxu0 0.0
      %537 = vmatmul.mubr.f32.gmra.mrb[0].mxu0 %v417
      %v538 = vpop.f32.mrb[0].mxu0
      %v539 = vadd.f32 0.0, %v538
      %v540 = vpop.f32.mrb[0].mxu0
      %541 = vmatprep.mubr.f32.mxu0 0.0
      %542 = vmatmul.mubr.f32.gmra.mrb[0].mxu0 %v420
      %v543 = vpop.f32.mrb[0].mxu0
      %v544 = vadd.f32 0.0, %v543
      %v545 = vpop.f32.mrb[0].mxu0
      %546 = vmatprep.mubr.f32.mxu0 0.0
      %547 = vmatmul.mubr.f32.gmra.mrb[0].mxu0 %v423
      %v548 = vpop.f32.mrb[0].mxu0
      %v549 = vadd.f32 0.0, %v548
      %v550 = vpop.f32.mrb[0].mxu0
      %551 = vmatprep.mubr.f32.mxu0 0.0
      %552 = vmatmul.mubr.f32.gmra.mrb[0].mxu0 %v426
      %v553 = vpop.f32.mrb[0].mxu0
      %v554 = vadd.f32 0.0, %v553
      %v555 = vpop.f32.mrb[0].mxu0
      %556 = vmatprep.mubr.f32.mxu0 0.0
      %557 = vmatmul.mubr.f32.gmra.mrb[0].mxu0 %v429
      %v558 = vpop.f32.mrb[0].mxu0
      %v559 = vadd.f32 0.0, %v558
      %v560 = vpop.f32.mrb[0].mxu0
      %561 = vmatprep.mubr.f32.mxu0 0.0
      %562 = vmatmul.mubr.f32.gmra.mrb[0].mxu0 %v432
      %v563 = vpop.f32.mrb[0].mxu0
      %v564 = vadd.f32 0.0, %v563
      %v565 = vpop.f32.mrb[0].mxu0
      %566 = vmatprep.mubr.f32.mxu0 0.0
      %567 = vmatmul.mubr.f32.gmra.mrb[0].mxu0 %v435
      %v568 = vpop.f32.mrb[0].mxu0
      %v569 = vadd.f32 0.0, %v568
      %v570 = vpop.f32.mrb[0].mxu0
      %571 = vmatprep.mubr.f32.mxu0 0.0
      %572 = vmatmul.mubr.f32.gmra.mrb[0].mxu0 %v438
      %v573 = vpop.f32.mrb[0].mxu0
      %v574 = vadd.f32 0.0, %v573
      %v575 = vpop.f32.mrb[0].mxu0
      %576 = vmatprep.mubr.f32.mxu0 0.0
      %577 = vmatmul.mubr.f32.gmra.mrb[0].mxu0 %v441
      %v578 = vpop.f32.mrb[0].mxu0
      %v579 = vadd.f32 0.0, %v578
      %v580 = vpop.f32.mrb[0].mxu0
      %581 = vmatprep.mubr.f32.mxu0 0.0
      %582 = vmatmul.mubr.f32.gmra.mrb[0].mxu0 %v444
      %v583 = vpop.f32.mrb[0].mxu0
      %v584 = vadd.f32 0.0, %v583
      %v585 = vpop.f32.mrb[0].mxu0
      %586 = vmatprep.mubr.f32.mxu0 0.0
      %587 = vmatmul.mubr.f32.gmra.mrb[0].mxu0 %v447
      %v588 = vpop.f32.mrb[0].mxu0
      %v589 = vadd.f32 0.0, %v588
      %v590 = vpop.f32.mrb[0].mxu0
      %591 = vmatprep.mubr.f32.mxu0 0.0
      %592 = vmatmul.mubr.f32.gmra.mrb[0].mxu0 %v450
      %v593 = vpop.f32.mrb[0].mxu0
      %v594 = vadd.f32 0.0, %v593
      %v595 = vpop.f32.mrb[0].mxu0
      %596 = vdwg.mxu0
      %v597 = vld [vmem:[#allocation3] sm:$0xff]
      %v598 = vld [vmem:[#allocation3 + $0x8] sm:$0xff]
      %v599 = vld [vmem:[#allocation3 + $0x10] sm:$0xff]
      %v600 = vld [vmem:[#allocation3 + $0x18] sm:$0xff]
      %v601 = vld [vmem:[#allocation3 + $0x20] sm:$0xff]
      %v602 = vld [vmem:[#allocation3 + $0x28] sm:$0xff]
      %v603 = vld [vmem:[#allocation3 + $0x30] sm:$0xff]
      %v604 = vld [vmem:[#allocation3 + $0x38] sm:$0xff]
      %v605 = vld [vmem:[#allocation3 + $0x40] sm:$0xff]
      %v606 = vld [vmem:[#allocation3 + $0x48] sm:$0xff]
      %v607 = vld [vmem:[#allocation3 + $0x50] sm:$0xff]
      %v608 = vld [vmem:[#allocation3 + $0x58] sm:$0xff]
      %v609 = vld [vmem:[#allocation3 + $0x60] sm:$0xff]
      %v610 = vld [vmem:[#allocation3 + $0x68] sm:$0xff]
      %v611 = vld [vmem:[#allocation3 + $0x70] sm:$0xff]
      %v612 = vld [vmem:[#allocation3 + $0x78] sm:$0xff]
      %613 = vmax.xlane.f32.xlu0 %v519
      %v614 = vpop.xlane.xlu0 %613
      %615 = vmax.xlane.f32.xlu0 %v524
      %v616 = vpop.xlane.xlu0 %615
      %617 = vmax.xlane.f32.xlu0 %v529
      %v618 = vpop.xlane.xlu0 %617
      %619 = vmax.xlane.f32.xlu0 %v534
      %v620 = vpop.xlane.xlu0 %619
      %621 = vmax.xlane.f32.xlu0 %v539
      %v622 = vpop.xlane.xlu0 %621
      %623 = vmax.xlane.f32.xlu0 %v544
      %v624 = vpop.xlane.xlu0 %623
      %625 = vmax.xlane.f32.xlu0 %v549
      %v626 = vpop.xlane.xlu0 %625
      %627 = vmax.xlane.f32.xlu0 %v554
      %v628 = vpop.xlane.xlu0 %627
      %629 = vmax.xlane.f32.xlu0 %v559
      %v630 = vpop.xlane.xlu0 %629
      %631 = vmax.xlane.f32.xlu0 %v564
      %v632 = vpop.xlane.xlu0 %631
      %633 = vmax.xlane.f32.xlu0 %v569
      %v634 = vpop.xlane.xlu0 %633
      %635 = vmax.xlane.f32.xlu0 %v574
      %v636 = vpop.xlane.xlu0 %635
      %637 = vmax.xlane.f32.xlu0 %v579
      %v638 = vpop.xlane.xlu0 %637
      %639 = vmax.xlane.f32.xlu0 %v584
      %v640 = vpop.xlane.xlu0 %639
      %641 = vmax.xlane.f32.xlu0 %v589
      %v642 = vpop.xlane.xlu0 %641
      %643 = vmax.xlane.f32.xlu0 %v594
      %v644 = vpop.xlane.xlu0 %643
      %v645 = vmax.f32 %v597, %v614
      %v646 = vmax.f32 %v598, %v616
      %v647 = vmax.f32 %v599, %v618
      %v648 = vmax.f32 %v600, %v620
      %v649 = vmax.f32 %v601, %v622
      %v650 = vmax.f32 %v602, %v624
      %v651 = vmax.f32 %v603, %v626
      %v652 = vmax.f32 %v604, %v628
      %v653 = vmax.f32 %v605, %v630
      %v654 = vmax.f32 %v606, %v632
      %v655 = vmax.f32 %v607, %v634
      %v656 = vmax.f32 %v608, %v636
      %v657 = vmax.f32 %v609, %v638
      %v658 = vmax.f32 %v610, %v640
      %v659 = vmax.f32 %v611, %v642
      %v660 = vmax.f32 %v612, %v644
      %v661 = vsub.f32 %v597, %v645
      %v662 = vsub.f32 %v598, %v646
      %v663 = vsub.f32 %v599, %v647
      %v664 = vsub.f32 %v600, %v648
      %v665 = vsub.f32 %v601, %v649
      %v666 = vsub.f32 %v602, %v650
      %v667 = vsub.f32 %v603, %v651
      %v668 = vsub.f32 %v604, %v652
      %v669 = vsub.f32 %v605, %v653
      %v670 = vsub.f32 %v606, %v654
      %v671 = vsub.f32 %v607, %v655
      %v672 = vsub.f32 %v608, %v656
      %v673 = vsub.f32 %v609, %v657
      %v674 = vsub.f32 %v610, %v658
      %v675 = vsub.f32 %v611, %v659
      %v676 = vsub.f32 %v612, %v660
      %v677 = vmul.f32 %v661, 1.442695
      %v678 = vpow.pop %v677
      %v679 = vmul.f32 %v662, 1.442695
      %v680 = vpow.pop %v679
      %v681 = vmul.f32 %v663, 1.442695
      %v682 = vpow.pop %v681
      %v683 = vmul.f32 %v664, 1.442695
      %v684 = vpow.pop %v683
      %v685 = vmul.f32 %v665, 1.442695
      %v686 = vpow.pop %v685
      %v687 = vmul.f32 %v666, 1.442695
      %v688 = vpow.pop %v687
      %v689 = vmul.f32 %v667, 1.442695
      %v690 = vpow.pop %v689
      %v691 = vmul.f32 %v668, 1.442695
      %v692 = vpow.pop %v691
      %v693 = vmul.f32 %v669, 1.442695
      %v694 = vpow.pop %v693
      %v695 = vmul.f32 %v670, 1.442695
      %v696 = vpow.pop %v695
      %v697 = vmul.f32 %v671, 1.442695
      %v698 = vpow.pop %v697
      %v699 = vmul.f32 %v672, 1.442695
      %v700 = vpow.pop %v699
      %v701 = vmul.f32 %v673, 1.442695
      %v702 = vpow.pop %v701
      %v703 = vmul.f32 %v674, 1.442695
      %v704 = vpow.pop %v703
      %v705 = vmul.f32 %v675, 1.442695
      %v706 = vpow.pop %v705
      %v707 = vmul.f32 %v676, 1.442695
      %v708 = vpow.pop %v707
      %710 = vset.pattern.permute.xlu0 0
      %711 = vperm.xlu0 %710, %v645
      %v712 = vpop.permute.xlu0 %711
      %715 = vset.pattern.permute.xlu0 0
      %716 = vperm.xlu0 %715, %v646
      %v717 = vpop.permute.xlu0 %716
      %720 = vset.pattern.permute.xlu0 0
      %721 = vperm.xlu0 %720, %v647
      %v722 = vpop.permute.xlu0 %721
      %725 = vset.pattern.permute.xlu0 0
      %726 = vperm.xlu0 %725, %v648
      %v727 = vpop.permute.xlu0 %726
      %730 = vset.pattern.permute.xlu0 0
      %731 = vperm.xlu0 %730, %v649
      %v732 = vpop.permute.xlu0 %731
      %735 = vset.pattern.permute.xlu0 0
      %736 = vperm.xlu0 %735, %v650
      %v737 = vpop.permute.xlu0 %736
      %740 = vset.pattern.permute.xlu0 0
      %741 = vperm.xlu0 %740, %v651
      %v742 = vpop.permute.xlu0 %741
      %745 = vset.pattern.permute.xlu0 0
      %746 = vperm.xlu0 %745, %v652
      %v747 = vpop.permute.xlu0 %746
      %750 = vset.pattern.permute.xlu0 0
      %751 = vperm.xlu0 %750, %v653
      %v752 = vpop.permute.xlu0 %751
      %755 = vset.pattern.permute.xlu0 0
      %756 = vperm.xlu0 %755, %v654
      %v757 = vpop.permute.xlu0 %756
      %760 = vset.pattern.permute.xlu0 0
      %761 = vperm.xlu0 %760, %v655
      %v762 = vpop.permute.xlu0 %761
      %765 = vset.pattern.permute.xlu0 0
      %766 = vperm.xlu0 %765, %v656
      %v767 = vpop.permute.xlu0 %766
      %770 = vset.pattern.permute.xlu0 0
      %771 = vperm.xlu0 %770, %v657
      %v772 = vpop.permute.xlu0 %771
      %775 = vset.pattern.permute.xlu0 0
      %776 = vperm.xlu0 %775, %v658
      %v777 = vpop.permute.xlu0 %776
      %780 = vset.pattern.permute.xlu0 0
      %781 = vperm.xlu0 %780, %v659
      %v782 = vpop.permute.xlu0 %781
      %785 = vset.pattern.permute.xlu0 0
      %786 = vperm.xlu0 %785, %v660
      %v787 = vpop.permute.xlu0 %786
      %v789 = vsub.f32 %v519, %v712
      %v790 = vsub.f32 %v524, %v717
      %v791 = vsub.f32 %v529, %v722
      %v792 = vsub.f32 %v534, %v727
      %v793 = vsub.f32 %v539, %v732
      %v794 = vsub.f32 %v544, %v737
      %v795 = vsub.f32 %v549, %v742
      %v796 = vsub.f32 %v554, %v747
      %v797 = vsub.f32 %v559, %v752
      %v798 = vsub.f32 %v564, %v757
      %v799 = vsub.f32 %v569, %v762
      %v800 = vsub.f32 %v574, %v767
      %v801 = vsub.f32 %v579, %v772
      %v802 = vsub.f32 %v584, %v777
      %v803 = vsub.f32 %v589, %v782
      %v804 = vsub.f32 %v594, %v787
      %v805 = vmul.f32 %v789, 1.442695
      %v806 = vpow.pop %v805
      %v807 = vmul.f32 %v790, 1.442695
      %v808 = vpow.pop %v807
      %v809 = vmul.f32 %v791, 1.442695
      %v810 = vpow.pop %v809
      %v811 = vmul.f32 %v792, 1.442695
      %v812 = vpow.pop %v811
      %v813 = vmul.f32 %v793, 1.442695
      %v814 = vpow.pop %v813
      %v815 = vmul.f32 %v794, 1.442695
      %v816 = vpow.pop %v815
      %v817 = vmul.f32 %v795, 1.442695
      %v818 = vpow.pop %v817
      %v819 = vmul.f32 %v796, 1.442695
      %v820 = vpow.pop %v819
      %v821 = vmul.f32 %v797, 1.442695
      %v822 = vpow.pop %v821
      %v823 = vmul.f32 %v798, 1.442695
      %v824 = vpow.pop %v823
      %v825 = vmul.f32 %v799, 1.442695
      %v826 = vpow.pop %v825
      %v827 = vmul.f32 %v800, 1.442695
      %v828 = vpow.pop %v827
      %v829 = vmul.f32 %v801, 1.442695
      %v830 = vpow.pop %v829
      %v831 = vmul.f32 %v802, 1.442695
      %v832 = vpow.pop %v831
      %v833 = vmul.f32 %v803, 1.442695
      %v834 = vpow.pop %v833
      %v835 = vmul.f32 %v804, 1.442695
      %v836 = vpow.pop %v835
      %v837 = vld [vmem:[%s272] sm:$0xff]
      %v838 = vld [vmem:[%s272 + $0x8] sm:$0xff]
      %v839 = vld [vmem:[%s272 + $0x10] sm:$0xff]
      %v840 = vld [vmem:[%s272 + $0x18] sm:$0xff]
      %v841 = vld [vmem:[%s272 + $0x20] sm:$0xff]
      %v842 = vld [vmem:[%s272 + $0x28] sm:$0xff]
      %v843 = vld [vmem:[%s272 + $0x30] sm:$0xff]
      %v844 = vld [vmem:[%s272 + $0x38] sm:$0xff]
      %v845 = vld [vmem:[%s272 + $0x40] sm:$0xff]
      %v846 = vld [vmem:[%s272 + $0x48] sm:$0xff]
      %v847 = vld [vmem:[%s272 + $0x50] sm:$0xff]
      %v848 = vld [vmem:[%s272 + $0x58] sm:$0xff]
      %v849 = vld [vmem:[%s272 + $0x60] sm:$0xff]
      %v850 = vld [vmem:[%s272 + $0x68] sm:$0xff]
      %v851 = vld [vmem:[%s272 + $0x70] sm:$0xff]
      %v852 = vld [vmem:[%s272 + $0x78] sm:$0xff]
      %853 = vmatprep.subr.mxu0 0.0
      %854 = vmatpush1.msra.mxu0 %v837
      %855 = vmatprep.subr.mxu0 0.0
      %856 = vmatpush1.msra.mxu0 %v838
      %857 = vmatprep.subr.mxu0 0.0
      %858 = vmatpush1.msra.mxu0 %v839
      %859 = vmatprep.subr.mxu0 0.0
      %860 = vmatpush1.msra.mxu0 %v840
      %861 = vmatprep.subr.mxu0 0.0
      %862 = vmatpush1.msra.mxu0 %v841
      %863 = vmatprep.subr.mxu0 0.0
      %864 = vmatpush1.msra.mxu0 %v842
      %865 = vmatprep.subr.mxu0 0.0
      %866 = vmatpush1.msra.mxu0 %v843
      %867 = vmatprep.subr.mxu0 0.0
      %868 = vmatpush1.msra.mxu0 %v844
      %869 = vmatprep.subr.mxu0 0.0
      %870 = vmatpush1.msra.mxu0 %v845
      %871 = vmatprep.subr.mxu0 0.0
      %872 = vmatpush1.msra.mxu0 %v846
      %873 = vmatprep.subr.mxu0 0.0
      %874 = vmatpush1.msra.mxu0 %v847
      %875 = vmatprep.subr.mxu0 0.0
      %876 = vmatpush1.msra.mxu0 %v848
      %877 = vmatprep.subr.mxu0 0.0
      %878 = vmatpush1.msra.mxu0 %v849
      %879 = vmatprep.subr.mxu0 0.0
      %880 = vmatpush1.msra.mxu0 %v850
      %881 = vmatprep.subr.mxu0 0.0
      %882 = vmatpush1.msra.mxu0 %v851
      %883 = vmatprep.subr.mxu0 0.0
      %884 = vmatpush1.msra.mxu0 %v852
      %885 = vmatprep.subr.mxu0 0.0
      %886 = vmatpush1.msra.mxu0 0.0
      %887 = vmatprep.subr.mxu0 0.0
      %888 = vmatpush1.msra.mxu0 0.0
      %889 = vmatprep.subr.mxu0 0.0
      %890 = vmatpush1.msra.mxu0 0.0
      %891 = vmatprep.subr.mxu0 0.0
      %892 = vmatpush1.msra.mxu0 0.0
      %893 = vmatprep.subr.mxu0 0.0
      %894 = vmatpush1.msra.mxu0 0.0
      %895 = vmatprep.subr.mxu0 0.0
      %896 = vmatpush1.msra.mxu0 0.0
      %897 = vmatprep.subr.mxu0 0.0
      %898 = vmatpush1.msra.mxu0 0.0
      %899 = vmatprep.subr.mxu0 0.0
      %900 = vmatpush1.msra.mxu0 0.0
      %901 = vmatprep.subr.mxu0 0.0
      %902 = vmatpush1.msra.mxu0 0.0
      %903 = vmatprep.subr.mxu0 0.0
      %904 = vmatpush1.msra.mxu0 0.0
      %905 = vmatprep.subr.mxu0 0.0
      %906 = vmatpush1.msra.mxu0 0.0
      %907 = vmatprep.subr.mxu0 0.0
      %908 = vmatpush1.msra.mxu0 0.0
      %909 = vmatprep.subr.mxu0 0.0
      %910 = vmatpush1.msra.mxu0 0.0
      %911 = vmatprep.subr.mxu0 0.0
      %912 = vmatpush1.msra.mxu0 0.0
      %913 = vmatprep.subr.mxu0 0.0
      %914 = vmatpush1.msra.mxu0 0.0
      %915 = vmatprep.subr.mxu0 0.0
      %916 = vmatpush1.msra.mxu0 0.0
      %917 = vmatprep.mubr.f32.mxu0 0.0
      %918 = vmatmul.mubr.f32.gmra.mrb[0].mxu0 %v806
      %v919 = vpop.f32.mrb[0].mxu0
      %v920 = vadd.f32 0.0, %v919
      %v921 = vpop.f32.mrb[0].mxu0
      %922 = vmatprep.mubr.f32.mxu0 0.0
      %923 = vmatmul.mubr.f32.gmra.mrb[0].mxu0 %v808
      %v924 = vpop.f32.mrb[0].mxu0
      %v925 = vadd.f32 0.0, %v924
      %v926 = vpop.f32.mrb[0].mxu0
      %927 = vmatprep.mubr.f32.mxu0 0.0
      %928 = vmatmul.mubr.f32.gmra.mrb[0].mxu0 %v810
      %v929 = vpop.f32.mrb[0].mxu0
      %v930 = vadd.f32 0.0, %v929
      %v931 = vpop.f32.mrb[0].mxu0
      %932 = vmatprep.mubr.f32.mxu0 0.0
      %933 = vmatmul.mubr.f32.gmra.mrb[0].mxu0 %v812
      %v934 = vpop.f32.mrb[0].mxu0
      %v935 = vadd.f32 0.0, %v934
      %v936 = vpop.f32.mrb[0].mxu0
      %937 = vmatprep.mubr.f32.mxu0 0.0
      %938 = vmatmul.mubr.f32.gmra.mrb[0].mxu0 %v814
      %v939 = vpop.f32.mrb[0].mxu0
      %v940 = vadd.f32 0.0, %v939
      %v941 = vpop.f32.mrb[0].mxu0
      %942 = vmatprep.mubr.f32.mxu0 0.0
      %943 = vmatmul.mubr.f32.gmra.mrb[0].mxu0 %v816
      %v944 = vpop.f32.mrb[0].mxu0
      %v945 = vadd.f32 0.0, %v944
      %v946 = vpop.f32.mrb[0].mxu0
      %947 = vmatprep.mubr.f32.mxu0 0.0
      %948 = vmatmul.mubr.f32.gmra.mrb[0].mxu0 %v818
      %v949 = vpop.f32.mrb[0].mxu0
      %v950 = vadd.f32 0.0, %v949
      %v951 = vpop.f32.mrb[0].mxu0
      %952 = vmatprep.mubr.f32.mxu0 0.0
      %953 = vmatmul.mubr.f32.gmra.mrb[0].mxu0 %v820
      %v954 = vpop.f32.mrb[0].mxu0
      %v955 = vadd.f32 0.0, %v954
      %v956 = vpop.f32.mrb[0].mxu0
      %957 = vmatprep.mubr.f32.mxu0 0.0
      %958 = vmatmul.mubr.f32.gmra.mrb[0].mxu0 %v822
      %v959 = vpop.f32.mrb[0].mxu0
      %v960 = vadd.f32 0.0, %v959
      %v961 = vpop.f32.mrb[0].mxu0
      %962 = vmatprep.mubr.f32.mxu0 0.0
      %963 = vmatmul.mubr.f32.gmra.mrb[0].mxu0 %v824
      %v964 = vpop.f32.mrb[0].mxu0
      %v965 = vadd.f32 0.0, %v964
      %v966 = vpop.f32.mrb[0].mxu0
      %967 = vmatprep.mubr.f32.mxu0 0.0
      %968 = vmatmul.mubr.f32.gmra.mrb[0].mxu0 %v826
      %v969 = vpop.f32.mrb[0].mxu0
      %v970 = vadd.f32 0.0, %v969
      %v971 = vpop.f32.mrb[0].mxu0
      %972 = vmatprep.mubr.f32.mxu0 0.0
      %973 = vmatmul.mubr.f32.gmra.mrb[0].mxu0 %v828
      %v974 = vpop.f32.mrb[0].mxu0
      %v975 = vadd.f32 0.0, %v974
      %v976 = vpop.f32.mrb[0].mxu0
      %977 = vmatprep.mubr.f32.mxu0 0.0
      %978 = vmatmul.mubr.f32.gmra.mrb[0].mxu0 %v830
      %v979 = vpop.f32.mrb[0].mxu0
      %v980 = vadd.f32 0.0, %v979
      %v981 = vpop.f32.mrb[0].mxu0
      %982 = vmatprep.mubr.f32.mxu0 0.0
      %983 = vmatmul.mubr.f32.gmra.mrb[0].mxu0 %v832
      %v984 = vpop.f32.mrb[0].mxu0
      %v985 = vadd.f32 0.0, %v984
      %v986 = vpop.f32.mrb[0].mxu0
      %987 = vmatprep.mubr.f32.mxu0 0.0
      %988 = vmatmul.mubr.f32.gmra.mrb[0].mxu0 %v834
      %v989 = vpop.f32.mrb[0].mxu0
      %v990 = vadd.f32 0.0, %v989
      %v991 = vpop.f32.mrb[0].mxu0
      %992 = vmatprep.mubr.f32.mxu0 0.0
      %993 = vmatmul.mubr.f32.gmra.mrb[0].mxu0 %v836
      %v994 = vpop.f32.mrb[0].mxu0
      %v995 = vadd.f32 0.0, %v994
      %v996 = vpop.f32.mrb[0].mxu0
      %997 = vdwg.mxu0
      %v998 = vld [vmem:[#allocation4] sm:$0xff]
      %v999 = vld [vmem:[#allocation4 + $0x8] sm:$0xff]
      %v1000 = vld [vmem:[#allocation4 + $0x10] sm:$0xff]
      %v1001 = vld [vmem:[#allocation4 + $0x18] sm:$0xff]
      %v1002 = vld [vmem:[#allocation4 + $0x20] sm:$0xff]
      %v1003 = vld [vmem:[#allocation4 + $0x28] sm:$0xff]
      %v1004 = vld [vmem:[#allocation4 + $0x30] sm:$0xff]
      %v1005 = vld [vmem:[#allocation4 + $0x38] sm:$0xff]
      %v1006 = vld [vmem:[#allocation4 + $0x40] sm:$0xff]
      %v1007 = vld [vmem:[#allocation4 + $0x48] sm:$0xff]
      %v1008 = vld [vmem:[#allocation4 + $0x50] sm:$0xff]
      %v1009 = vld [vmem:[#allocation4 + $0x58] sm:$0xff]
      %v1010 = vld [vmem:[#allocation4 + $0x60] sm:$0xff]
      %v1011 = vld [vmem:[#allocation4 + $0x68] sm:$0xff]
      %v1012 = vld [vmem:[#allocation4 + $0x70] sm:$0xff]
      %v1013 = vld [vmem:[#allocation4 + $0x78] sm:$0xff]
      %v1014 = vmul.f32 %v678, %v998
      %v1015 = vmul.f32 %v680, %v999
      %v1016 = vmul.f32 %v682, %v1000
      %v1017 = vmul.f32 %v684, %v1001
      %v1018 = vmul.f32 %v686, %v1002
      %v1019 = vmul.f32 %v688, %v1003
      %v1020 = vmul.f32 %v690, %v1004
      %v1021 = vmul.f32 %v692, %v1005
      %v1022 = vmul.f32 %v694, %v1006
      %v1023 = vmul.f32 %v696, %v1007
      %v1024 = vmul.f32 %v698, %v1008
      %v1025 = vmul.f32 %v700, %v1009
      %v1026 = vmul.f32 %v702, %v1010
      %v1027 = vmul.f32 %v704, %v1011
      %v1028 = vmul.f32 %v706, %v1012
      %v1029 = vmul.f32 %v708, %v1013
      %v1030 = vadd.f32 %v1014, %v920
      %v1031 = vadd.f32 %v1015, %v925
      %v1032 = vadd.f32 %v1016, %v930
      %v1033 = vadd.f32 %v1017, %v935
      %v1034 = vadd.f32 %v1018, %v940
      %v1035 = vadd.f32 %v1019, %v945
      %v1036 = vadd.f32 %v1020, %v950
      %v1037 = vadd.f32 %v1021, %v955
      %v1038 = vadd.f32 %v1022, %v960
      %v1039 = vadd.f32 %v1023, %v965
      %v1040 = vadd.f32 %v1024, %v970
      %v1041 = vadd.f32 %v1025, %v975
      %v1042 = vadd.f32 %v1026, %v980
      %v1043 = vadd.f32 %v1027, %v985
      %v1044 = vadd.f32 %v1028, %v990
      %v1045 = vadd.f32 %v1029, %v995
      %vm1046 = vcmask 7168
      %1047 = vst.msk [vmem:[#allocation4] sm:$0xff] %vm1046, %v1030
      %1048 = vst.msk [vmem:[#allocation4 + $0x8] sm:$0xff] %vm1046, %v1031
      %1049 = vst.msk [vmem:[#allocation4 + $0x10] sm:$0xff] %vm1046, %v1032
      %1050 = vst.msk [vmem:[#allocation4 + $0x18] sm:$0xff] %vm1046, %v1033
      %1051 = vst.msk [vmem:[#allocation4 + $0x20] sm:$0xff] %vm1046, %v1034
      %1052 = vst.msk [vmem:[#allocation4 + $0x28] sm:$0xff] %vm1046, %v1035
      %1053 = vst.msk [vmem:[#allocation4 + $0x30] sm:$0xff] %vm1046, %v1036
      %1054 = vst.msk [vmem:[#allocation4 + $0x38] sm:$0xff] %vm1046, %v1037
      %1055 = vst.msk [vmem:[#allocation4 + $0x40] sm:$0xff] %vm1046, %v1038
      %1056 = vst.msk [vmem:[#allocation4 + $0x48] sm:$0xff] %vm1046, %v1039
      %1057 = vst.msk [vmem:[#allocation4 + $0x50] sm:$0xff] %vm1046, %v1040
      %1058 = vst.msk [vmem:[#allocation4 + $0x58] sm:$0xff] %vm1046, %v1041
      %1059 = vst.msk [vmem:[#allocation4 + $0x60] sm:$0xff] %vm1046, %v1042
      %1060 = vst.msk [vmem:[#allocation4 + $0x68] sm:$0xff] %vm1046, %v1043
      %1061 = vst.msk [vmem:[#allocation4 + $0x70] sm:$0xff] %vm1046, %v1044
      %1062 = vst.msk [vmem:[#allocation4 + $0x78] sm:$0xff] %vm1046, %v1045
      %v1063 = vld [vmem:[#allocation5] sm:$0xff]
      %v1064 = vld [vmem:[#allocation5 + $0x8] sm:$0xff]
      %v1065 = vld [vmem:[#allocation5 + $0x10] sm:$0xff]
      %v1066 = vld [vmem:[#allocation5 + $0x18] sm:$0xff]
      %v1067 = vld [vmem:[#allocation5 + $0x20] sm:$0xff]
      %v1068 = vld [vmem:[#allocation5 + $0x28] sm:$0xff]
      %v1069 = vld [vmem:[#allocation5 + $0x30] sm:$0xff]
      %v1070 = vld [vmem:[#allocation5 + $0x38] sm:$0xff]
      %v1071 = vld [vmem:[#allocation5 + $0x40] sm:$0xff]
      %v1072 = vld [vmem:[#allocation5 + $0x48] sm:$0xff]
      %v1073 = vld [vmem:[#allocation5 + $0x50] sm:$0xff]
      %v1074 = vld [vmem:[#allocation5 + $0x58] sm:$0xff]
      %v1075 = vld [vmem:[#allocation5 + $0x60] sm:$0xff]
      %v1076 = vld [vmem:[#allocation5 + $0x68] sm:$0xff]
      %v1077 = vld [vmem:[#allocation5 + $0x70] sm:$0xff]
      %v1078 = vld [vmem:[#allocation5 + $0x78] sm:$0xff]
      %v1079 = vmul.f32 %v678, %v1063
      %v1080 = vmul.f32 %v680, %v1064
      %v1081 = vmul.f32 %v682, %v1065
      %v1082 = vmul.f32 %v684, %v1066
      %v1083 = vmul.f32 %v686, %v1067
      %v1084 = vmul.f32 %v688, %v1068
      %v1085 = vmul.f32 %v690, %v1069
      %v1086 = vmul.f32 %v692, %v1070
      %v1087 = vmul.f32 %v694, %v1071
      %v1088 = vmul.f32 %v696, %v1072
      %v1089 = vmul.f32 %v698, %v1073
      %v1090 = vmul.f32 %v700, %v1074
      %v1091 = vmul.f32 %v702, %v1075
      %v1092 = vmul.f32 %v704, %v1076
      %v1093 = vmul.f32 %v706, %v1077
      %v1094 = vmul.f32 %v708, %v1078
      %1111 = vrot.lane.b32.xlu0 %v920, 127
      %v1112 = vpop.permute.xlu0 %1111
      %1113 = vrot.lane.b32.xlu0 %v925, 127
      %v1114 = vpop.permute.xlu0 %1113
      %1115 = vrot.lane.b32.xlu0 %v930, 127
      %v1116 = vpop.permute.xlu0 %1115
      %1117 = vrot.lane.b32.xlu0 %v935, 127
      %v1118 = vpop.permute.xlu0 %1117
      %1119 = vrot.lane.b32.xlu0 %v940, 127
      %v1120 = vpop.permute.xlu0 %1119
      %1121 = vrot.lane.b32.xlu0 %v945, 127
      %v1122 = vpop.permute.xlu0 %1121
      %1123 = vrot.lane.b32.xlu0 %v950, 127
      %v1124 = vpop.permute.xlu0 %1123
      %1125 = vrot.lane.b32.xlu0 %v955, 127
      %v1126 = vpop.permute.xlu0 %1125
      %1127 = vrot.lane.b32.xlu0 %v960, 127
      %v1128 = vpop.permute.xlu0 %1127
      %1129 = vrot.lane.b32.xlu0 %v965, 127
      %v1130 = vpop.permute.xlu0 %1129
      %1131 = vrot.lane.b32.xlu0 %v970, 127
      %v1132 = vpop.permute.xlu0 %1131
      %1133 = vrot.lane.b32.xlu0 %v975, 127
      %v1134 = vpop.permute.xlu0 %1133
      %1135 = vrot.lane.b32.xlu0 %v980, 127
      %v1136 = vpop.permute.xlu0 %1135
      %1137 = vrot.lane.b32.xlu0 %v985, 127
      %v1138 = vpop.permute.xlu0 %1137
      %1139 = vrot.lane.b32.xlu0 %v990, 127
      %v1140 = vpop.permute.xlu0 %1139
      %1141 = vrot.lane.b32.xlu0 %v995, 127
      %v1142 = vpop.permute.xlu0 %1141
      %v1159 = vadd.f32 %v1079, %v1112
      %v1160 = vadd.f32 %v1080, %v1114
      %v1161 = vadd.f32 %v1081, %v1116
      %v1162 = vadd.f32 %v1082, %v1118
      %v1163 = vadd.f32 %v1083, %v1120
      %v1164 = vadd.f32 %v1084, %v1122
      %v1165 = vadd.f32 %v1085, %v1124
      %v1166 = vadd.f32 %v1086, %v1126
      %v1167 = vadd.f32 %v1087, %v1128
      %v1168 = vadd.f32 %v1088, %v1130
      %v1169 = vadd.f32 %v1089, %v1132
      %v1170 = vadd.f32 %v1090, %v1134
      %v1171 = vadd.f32 %v1091, %v1136
      %v1172 = vadd.f32 %v1092, %v1138
      %v1173 = vadd.f32 %v1093, %v1140
      %v1174 = vadd.f32 %v1094, %v1142
      %1175 = vst.msk [vmem:[#allocation5] sm:$0xff] %vm1046, %v1159
      %1176 = vst.msk [vmem:[#allocation5 + $0x8] sm:$0xff] %vm1046, %v1160
      %1177 = vst.msk [vmem:[#allocation5 + $0x10] sm:$0xff] %vm1046, %v1161
      %1178 = vst.msk [vmem:[#allocation5 + $0x18] sm:$0xff] %vm1046, %v1162
      %1179 = vst.msk [vmem:[#allocation5 + $0x20] sm:$0xff] %vm1046, %v1163
      %1180 = vst.msk [vmem:[#allocation5 + $0x28] sm:$0xff] %vm1046, %v1164
      %1181 = vst.msk [vmem:[#allocation5 + $0x30] sm:$0xff] %vm1046, %v1165
      %1182 = vst.msk [vmem:[#allocation5 + $0x38] sm:$0xff] %vm1046, %v1166
      %1183 = vst.msk [vmem:[#allocation5 + $0x40] sm:$0xff] %vm1046, %v1167
      %1184 = vst.msk [vmem:[#allocation5 + $0x48] sm:$0xff] %vm1046, %v1168
      %1185 = vst.msk [vmem:[#allocation5 + $0x50] sm:$0xff] %vm1046, %v1169
      %1186 = vst.msk [vmem:[#allocation5 + $0x58] sm:$0xff] %vm1046, %v1170
      %1187 = vst.msk [vmem:[#allocation5 + $0x60] sm:$0xff] %vm1046, %v1171
      %1188 = vst.msk [vmem:[#allocation5 + $0x68] sm:$0xff] %vm1046, %v1172
      %1189 = vst.msk [vmem:[#allocation5 + $0x70] sm:$0xff] %vm1046, %v1173
      %1190 = vst.msk [vmem:[#allocation5 + $0x78] sm:$0xff] %vm1046, %v1174
      %1191 = vst.msk [vmem:[#allocation3] sm:$0xff] %vm1046, %v645
      %1192 = vst.msk [vmem:[#allocation3 + $0x8] sm:$0xff] %vm1046, %v646
      %1193 = vst.msk [vmem:[#allocation3 + $0x10] sm:$0xff] %vm1046, %v647
      %1194 = vst.msk [vmem:[#allocation3 + $0x18] sm:$0xff] %vm1046, %v648
      %1195 = vst.msk [vmem:[#allocation3 + $0x20] sm:$0xff] %vm1046, %v649
      %1196 = vst.msk [vmem:[#allocation3 + $0x28] sm:$0xff] %vm1046, %v650
      %1197 = vst.msk [vmem:[#allocation3 + $0x30] sm:$0xff] %vm1046, %v651
      %1198 = vst.msk [vmem:[#allocation3 + $0x38] sm:$0xff] %vm1046, %v652
      %1199 = vst.msk [vmem:[#allocation3 + $0x40] sm:$0xff] %vm1046, %v653
      %1200 = vst.msk [vmem:[#allocation3 + $0x48] sm:$0xff] %vm1046, %v654
      %1201 = vst.msk [vmem:[#allocation3 + $0x50] sm:$0xff] %vm1046, %v655
      %1202 = vst.msk [vmem:[#allocation3 + $0x58] sm:$0xff] %vm1046, %v656
      %1203 = vst.msk [vmem:[#allocation3 + $0x60] sm:$0xff] %vm1046, %v657
      %1204 = vst.msk [vmem:[#allocation3 + $0x68] sm:$0xff] %vm1046, %v658
      %1205 = vst.msk [vmem:[#allocation3 + $0x70] sm:$0xff] %vm1046, %v659
      %1206 = vst.msk [vmem:[#allocation3 + $0x78] sm:$0xff] %vm1046, %v660
      %p1207 = scmp.eq.s32.totalorder %s21, 1
      // Predicated region
      $region37: #{tpu_custom_call.1} parent=31 // pred_check
        %p1208 = pneg %p1207
      $region38: #{tpu_custom_call.1} parent=31 // pred_check_branch
        %1210 = sbr.rel (%p1208) target = $region40
      $region39: #{tpu_custom_call.1} parent=31 // pred_region
        %v1211 = vld [vmem:[#allocation5] sm:$0xff]
        %v1212 = vld [vmem:[#allocation5 + $0x8] sm:$0xff]
        %v1213 = vld [vmem:[#allocation5 + $0x10] sm:$0xff]
        %v1214 = vld [vmem:[#allocation5 + $0x18] sm:$0xff]
        %v1215 = vld [vmem:[#allocation5 + $0x20] sm:$0xff]
        %v1216 = vld [vmem:[#allocation5 + $0x28] sm:$0xff]
        %v1217 = vld [vmem:[#allocation5 + $0x30] sm:$0xff]
        %v1218 = vld [vmem:[#allocation5 + $0x38] sm:$0xff]
        %v1219 = vld [vmem:[#allocation5 + $0x40] sm:$0xff]
        %v1220 = vld [vmem:[#allocation5 + $0x48] sm:$0xff]
        %v1221 = vld [vmem:[#allocation5 + $0x50] sm:$0xff]
        %v1222 = vld [vmem:[#allocation5 + $0x58] sm:$0xff]
        %v1223 = vld [vmem:[#allocation5 + $0x60] sm:$0xff]
        %v1224 = vld [vmem:[#allocation5 + $0x68] sm:$0xff]
        %v1225 = vld [vmem:[#allocation5 + $0x70] sm:$0xff]
        %v1226 = vld [vmem:[#allocation5 + $0x78] sm:$0xff]
        %v1227 = vld [vmem:[#allocation4] sm:$0xff]
        %v1228 = vld [vmem:[#allocation4 + $0x8] sm:$0xff]
        %v1229 = vld [vmem:[#allocation4 + $0x10] sm:$0xff]
        %v1230 = vld [vmem:[#allocation4 + $0x18] sm:$0xff]
        %v1231 = vld [vmem:[#allocation4 + $0x20] sm:$0xff]
        %v1232 = vld [vmem:[#allocation4 + $0x28] sm:$0xff]
        %v1233 = vld [vmem:[#allocation4 + $0x30] sm:$0xff]
        %v1234 = vld [vmem:[#allocation4 + $0x38] sm:$0xff]
        %v1235 = vld [vmem:[#allocation4 + $0x40] sm:$0xff]
        %v1236 = vld [vmem:[#allocation4 + $0x48] sm:$0xff]
        %v1237 = vld [vmem:[#allocation4 + $0x50] sm:$0xff]
        %v1238 = vld [vmem:[#allocation4 + $0x58] sm:$0xff]
        %v1239 = vld [vmem:[#allocation4 + $0x60] sm:$0xff]
        %v1240 = vld [vmem:[#allocation4 + $0x68] sm:$0xff]
        %v1241 = vld [vmem:[#allocation4 + $0x70] sm:$0xff]
        %v1242 = vld [vmem:[#allocation4 + $0x78] sm:$0xff]
        %v1243 = vrcp.pop %v1227
        %v1244 = vrcp.pop %v1228
        %v1245 = vrcp.pop %v1229
        %v1246 = vrcp.pop %v1230
        %v1247 = vrcp.pop %v1231
        %v1248 = vrcp.pop %v1232
        %v1249 = vrcp.pop %v1233
        %v1250 = vrcp.pop %v1234
        %v1251 = vrcp.pop %v1235
        %v1252 = vrcp.pop %v1236
        %v1253 = vrcp.pop %v1237
        %v1254 = vrcp.pop %v1238
        %v1255 = vrcp.pop %v1239
        %v1256 = vrcp.pop %v1240
        %v1257 = vrcp.pop %v1241
        %v1258 = vrcp.pop %v1242
        %v1259 = vmul.f32 %v1211, %v1243
        %v1260 = vmul.f32 %v1212, %v1244
        %v1261 = vmul.f32 %v1213, %v1245
        %v1262 = vmul.f32 %v1214, %v1246
        %v1263 = vmul.f32 %v1215, %v1247
        %v1264 = vmul.f32 %v1216, %v1248
        %v1265 = vmul.f32 %v1217, %v1249
        %v1266 = vmul.f32 %v1218, %v1250
        %v1267 = vmul.f32 %v1219, %v1251
        %v1268 = vmul.f32 %v1220, %v1252
        %v1269 = vmul.f32 %v1221, %v1253
        %v1270 = vmul.f32 %v1222, %v1254
        %v1271 = vmul.f32 %v1223, %v1255
        %v1272 = vmul.f32 %v1224, %v1256
        %v1273 = vmul.f32 %v1225, %v1257
        %v1274 = vmul.f32 %v1226, %v1258
        %1275 = vst.msk [vmem:[%s282] sm:$0xff] %vm1046, %v1259
        %1276 = vst.msk [vmem:[%s282 + $0x8] sm:$0xff] %vm1046, %v1260
        %1277 = vst.msk [vmem:[%s282 + $0x10] sm:$0xff] %vm1046, %v1261
        %1278 = vst.msk [vmem:[%s282 + $0x18] sm:$0xff] %vm1046, %v1262
        %1279 = vst.msk [vmem:[%s282 + $0x20] sm:$0xff] %vm1046, %v1263
        %1280 = vst.msk [vmem:[%s282 + $0x28] sm:$0xff] %vm1046, %v1264
        %1281 = vst.msk [vmem:[%s282 + $0x30] sm:$0xff] %vm1046, %v1265
        %1282 = vst.msk [vmem:[%s282 + $0x38] sm:$0xff] %vm1046, %v1266
        %1283 = vst.msk [vmem:[%s282 + $0x40] sm:$0xff] %vm1046, %v1267
        %1284 = vst.msk [vmem:[%s282 + $0x48] sm:$0xff] %vm1046, %v1268
        %1285 = vst.msk [vmem:[%s282 + $0x50] sm:$0xff] %vm1046, %v1269
        %1286 = vst.msk [vmem:[%s282 + $0x58] sm:$0xff] %vm1046, %v1270
        %1287 = vst.msk [vmem:[%s282 + $0x60] sm:$0xff] %vm1046, %v1271
        %1288 = vst.msk [vmem:[%s282 + $0x68] sm:$0xff] %vm1046, %v1272
        %1289 = vst.msk [vmem:[%s282 + $0x70] sm:$0xff] %vm1046, %v1273
        %1290 = vst.msk [vmem:[%s282 + $0x78] sm:$0xff] %vm1046, %v1274
      $region40: #{tpu_custom_call.1} parent=31 // pred_fallthru
        _
      %s1291 = smul.u32 16, %s20
      %p1292 = scmp.lt.s32.totalorder %s19, 1
      %s1293 = scalar_select %p1292, %s19, 1
      %p1294 = scmp.lt.s32.totalorder %s1291, 31
      %s1295 = scalar_select %p1294, %s1291, 31
      %s1296 = smul.addr %s1293, 32
      %s1297 = sadd.s32 %s1295, %s1296
      %s1298 = smul.addr %s1297, 8
      %s1299 = scalar_lea.vmem %s3, %s1298
      // Predicated region
      $region41: #{tpu_custom_call.1} parent=31 // pred_check
        %p1300 = pneg %p137
      $region42: #{tpu_custom_call.1} parent=31 // pred_check_branch
        %1302 = sbr.rel (%p1300) target = $region44
      $region43: #{tpu_custom_call.1} parent=31 // pred_region
        %s1303 = smul.u32 16, %s20
      $region44: #{tpu_custom_call.1} parent=31 // pred_fallthru
        _
    $region32: #{tpu_custom_call.1} parent=5 // pred_fallthru
      _
    %p1304 = scmp.le.s32.totalorder 2, %s9
    // Predicated region
    $region45: #{tpu_custom_call.1} parent=5 // pred_check
      %p1305 = pneg %p1304
    $region46: #{tpu_custom_call.1} parent=5 // pred_check_branch
      %1307 = sbr.rel (%p1305) target = $region48
    $region47: #{tpu_custom_call.1} parent=5 // pred_region
      %s1308 = ssub.s32 %s9, 2
      // Predicated region
      $region49: #{tpu_custom_call.1} parent=47 // pred_check
        %p1309 = pneg %p143
      $region50: #{tpu_custom_call.1} parent=47 // pred_check_branch
        %1311 = sbr.rel (%p1309) target = $region52
      $region51: #{tpu_custom_call.1} parent=47 // pred_region
        %s1312 = smul.u32 16, %s23
        %p1313 = scmp.lt.s32.totalorder %s22, 1
        %s1314 = scalar_select %p1313, %s22, 1
        %p1315 = scmp.lt.s32.totalorder %s1312, 31
        %s1316 = scalar_select %p1315, %s1312, 31
        %s1317 = smul.addr %s1314, 32
        %s1318 = sadd.s32 %s1316, %s1317
        %s1319 = smul.addr %s1318, 8
        %s1320 = scalar_lea.vmem %s3, %s1319
      $region52: #{tpu_custom_call.1} parent=47 // pred_fallthru
        _
    $region48: #{tpu_custom_call.1} parent=5 // pred_fallthru
      _
  $region6: #{tpu_custom_call.1} parent=0 // loop_footer
    %s13 = sadd.s32 1, %s9
  $region7: #{tpu_custom_call.1} parent=0 // loop_footer_branch
    %8 = sbr.rel target = $region3
  $region8: #{tpu_custom_call.1} parent=0 // loop_exit
    _

</llo_original>
